<compile_context>
chip_gen: v6e
topology: v6e:2x2x1
jax: 0.10.0
libtpu: 0.0.40
codegen_flags: <defaults>
</compile_context>

<pallas_src>
import functools

import jax
import jax.numpy as jnp
from jax.experimental import pallas as pl
from jax.experimental.pallas import tpu as pltpu

IGNORE_INDEX = 255
_MAX_TILE_M = 8192
_VMEM_TILE_BUDGET = 12 * 1024 * 1024  # bytes for the double-buffered input tiles


def _choose_tile_m(n_pix, n_cls, itemsize):
    """Rows per tile so 2x-buffered (logits + targets) tiles fit comfortably in VMEM.

    VMEM stores arrays in (8,128)-tiled vregs, so a (TILE_M, C) buffer occupies
    ceil(C/128) lane-tiles per row regardless of how small C is.
    """
    lane_tiles = -(-n_cls // 128)
    bytes_per_row = lane_tiles * 128 * itemsize + 128 * 4   # logits row + int32 target row
    tile_m = _VMEM_TILE_BUDGET // (2 * bytes_per_row)       # 2 pipeline buffers
    tile_m = max(8, min(int(tile_m), _MAX_TILE_M))
    n_pix_pad = max(8, ((n_pix + 7) // 8) * 8)
    tile_m = min(tile_m, n_pix_pad)                         # don't over-allocate for tiny inputs
    return (tile_m // 8) * 8


def _ce_kernel(logits_ref, target_ref, out_ref, *, ignore_index, n_pix, tile_m):
    i = pl.program_id(0)

    x = logits_ref[...].astype(jnp.float32)   # (TILE_M, C)
    t = target_ref[...]                       # (TILE_M, 1) int32

    # Mask rows past the true pixel count (ragged last tile) and ignore_index pixels.
    row = jax.lax.broadcasted_iota(jnp.int32, t.shape, 0) + i * tile_m
    valid = (t != ignore_index) & (row < n_pix)               # (TILE_M, 1)

    # Numerically stable log-sum-exp over classes.
    m = jnp.max(x, axis=-1, keepdims=True)
    lse = jnp.log(jnp.sum(jnp.exp(x - m), axis=-1, keepdims=True)) + m

    # Gather the logit at the target class via iota/compare/select (no dynamic gather on TPU).
    cls = jax.lax.broadcasted_iota(jnp.int32, x.shape, 1)
    picked = jnp.sum(jnp.where(cls == t, x, 0.0), axis=-1, keepdims=True)

    per_pixel = jnp.where(valid, lse - picked, 0.0)           # -log p[target], masked
    tile_sum = jnp.sum(per_pixel)
    tile_cnt = jnp.sum(jnp.where(valid, 1.0, 0.0))

    # Write this tile's partial (sum, count) into its own lane-aligned (8,128) output block.
    r = jax.lax.broadcasted_iota(jnp.int32, (8, 128), 0)
    c = jax.lax.broadcasted_iota(jnp.int32, (8, 128), 1)
    blk = jnp.where((r == 0) & (c == 0), tile_sum,
                    jnp.where((r == 0) & (c == 1), tile_cnt, 0.0))
    out_ref[...] = blk.reshape(1, 8, 128)


def _cross_entropy_pallas(logits_2d, targets_2d, *, ignore_index):
    """logits_2d: (Npix, C) float; targets_2d: (Npix, 1) int32 -> scalar f32 mean loss."""
    n_pix, n_cls = logits_2d.shape
    itemsize = jnp.dtype(logits_2d.dtype).itemsize
    tile_m = _choose_tile_m(n_pix, n_cls, itemsize)
    num_tiles = pl.cdiv(n_pix, tile_m)

    kernel = functools.partial(
        _ce_kernel, ignore_index=ignore_index, n_pix=n_pix, tile_m=tile_m)

    partials = pl.pallas_call(
        kernel,
        out_shape=jax.ShapeDtypeStruct((num_tiles, 8, 128), jnp.float32),
        grid_spec=pltpu.PrefetchScalarGridSpec(
            num_scalar_prefetch=0,
            grid=(num_tiles,),
            in_specs=[
                pl.BlockSpec((tile_m, n_cls), lambda i: (i, 0)),
                pl.BlockSpec((tile_m, 1), lambda i: (i, 0)),
            ],
            out_specs=pl.BlockSpec((1, 8, 128), lambda i: (i, 0, 0)),
        ),
        compiler_params=pltpu.CompilerParams(
            dimension_semantics=("parallel",),       # no carried state -> megacore-friendly
            vmem_limit_bytes=32 * 1024 * 1024,       # explicit budget, safe on v5e/v6e/v7x
        ),
        cost_estimate=pl.CostEstimate(
            flops=5 * n_pix * n_cls,
            transcendentals=n_pix * n_cls,
            bytes_accessed=n_pix * n_cls * itemsize + n_pix * 4 + num_tiles * 8 * 128 * 4,
        ),
    )(logits_2d, targets_2d)

    total = jnp.sum(partials[:, 0, 0])
    count = jnp.sum(partials[:, 0, 1])
    # reduction='mean' over non-ignored pixels (0/0 -> NaN if everything is ignored,
    # matching PyTorch's behavior).
    return total / count


def _bilinear_align_corners(x, out_hw):
    """NCHW bilinear resize with align_corners=True (plain-JAX glue)."""
    B, C, H, W = x.shape
    Ho, Wo = out_hw
    ys = jnp.linspace(0.0, H - 1, Ho) if Ho > 1 else jnp.zeros((Ho,))
    xs = jnp.linspace(0.0, W - 1, Wo) if Wo > 1 else jnp.zeros((Wo,))
    y0 = jnp.floor(ys).astype(jnp.int32)
    x0 = jnp.floor(xs).astype(jnp.int32)
    y1 = jnp.minimum(y0 + 1, H - 1)
    x1 = jnp.minimum(x0 + 1, W - 1)
    wy = (ys - y0)[None, None, :, None]
    wx = (xs - x0)[None, None, None, :]
    g = lambda yi, xi: x[:, :, yi, :][:, :, :, xi]
    top = g(y0, x0) * (1 - wx) + g(y0, x1) * wx
    bot = g(y1, x0) * (1 - wx) + g(y1, x1) * wx
    return top * (1 - wy) + bot * wy


def cross_entropy_loss(logits_nchw, target, *, ignore_index=IGNORE_INDEX):
    """Forward pass of the PyTorch CrossEntropyLoss module (weight=None, reduction='mean')."""
    target = target.astype(jnp.int32)
    if target.ndim == 4:
        target = jnp.squeeze(target, axis=1)            # (B, H, W)

    if logits_nchw.shape[-1] != target.shape[-1]:
        logits_nchw = _bilinear_align_corners(logits_nchw, target.shape[1:])
    # TODO(synk): per-class `weight` tensor not supported (module default is None).

    B, C, H, W = logits_nchw.shape
    # NCHW -> (Npix, C) channels-last so classes sit on the lane axis.
    # Keep the native dtype (bf16 stays bf16 in HBM); the kernel upcasts per tile.
    logits_2d = jnp.transpose(logits_nchw, (0, 2, 3, 1)).reshape(B * H * W, C)
    targets_2d = target.reshape(B * H * W, 1)

    return _cross_entropy_pallas(logits_2d, targets_2d, ignore_index=ignore_index)


def _reference(logits_nchw, target, ignore_index=IGNORE_INDEX):
    """Plain-JAX reference for a sanity check."""
    target = target.astype(jnp.int32)
    if target.ndim == 4:
        target = jnp.squeeze(target, axis=1)
    B, C, H, W = logits_nchw.shape
    x = jnp.transpose(logits_nchw, (0, 2, 3, 1)).reshape(-1, C).astype(jnp.float32)
    t = target.reshape(-1)
    logp = x - jax.scipy.special.logsumexp(x, axis=-1, keepdims=True)
    valid = t != ignore_index
    t_safe = jnp.where(valid, t, 0)
    nll = -jnp.take_along_axis(logp, t_safe[:, None], axis=-1)[:, 0]
    nll = jnp.where(valid, nll, 0.0)
    return jnp.sum(nll) / jnp.sum(valid.astype(jnp.float32))


if __name__ == "__main__":
    key = jax.random.PRNGKey(0)
    k1, k2, k3 = jax.random.split(key, 3)

    B, C, H, W = 2, 4, 16, 16
    logits = jax.random.normal(k1, (B, C, H, W), dtype=jnp.float32)
    target = jax.random.randint(k2, (B, 1, H, W), 0, C)            # (B,1,H,W) like the module
    # sprinkle some ignore_index pixels
    ignore_mask = jax.random.bernoulli(k3, 0.1, (B, 1, H, W))
    target = jnp.where(ignore_mask, IGNORE_INDEX, target).astype(jnp.int32)

    loss = cross_entropy_loss(logits, target)
    loss = jax.block_until_ready(loss)

    ref = _reference(logits, target)
    assert jnp.allclose(loss, ref, rtol=1e-5, atol=1e-5), (loss, ref)

    print("KERNEL_OK")
</pallas_src>

<mosaic_0001>
module attributes {stable_mosaic.version = 11 : i64} {
  func.func @_ce_kernel(%arg0: i32, %arg1: memref<512x4xf32, #tpu.memory_space<vmem>>, %arg2: memref<512x1xi32, #tpu.memory_space<vmem>>, %arg3: memref<1x8x128xf32, #tpu.memory_space<vmem>>) attributes {dimension_semantics = [#tpu.dimension_semantics<parallel>], iteration_bounds = array<i64: 1>, scalar_prefetch = 0 : i64, scratch_operands = 0 : i64, tpu.core_type = #tpu.core_type<tc>, window_params = [{transform_indices = @transform_0, window_bounds = array<i64: 512, 4>}, {transform_indices = @transform_1, window_bounds = array<i64: 512, 1>}, {transform_indices = @transform_2, window_bounds = array<i64: 1, 8, 128>}]} {
    %c0 = arith.constant 0 : index
    %c0_0 = arith.constant 0 : index
    %0 = vector.load %arg1[%c0, %c0_0] : memref<512x4xf32, #tpu.memory_space<vmem>>, vector<512x4xf32>
    %c0_1 = arith.constant 0 : index
    %c0_2 = arith.constant 0 : index
    %1 = vector.load %arg2[%c0_1, %c0_2] : memref<512x1xi32, #tpu.memory_space<vmem>>, vector<512x1xi32>
    %2 = tpu.iota {dimensions = array<i32: 0>} : vector<512x1xi32>
    %c512_i32 = arith.constant 512 : i32
    %3 = arith.muli %arg0, %c512_i32 : i32
    %4 = vector.broadcast %3 : i32 to vector<512x1xi32>
    %5 = arith.addi %2, %4 : vector<512x1xi32>
    %c255_i32 = arith.constant 255 : i32
    %6 = vector.broadcast %c255_i32 : i32 to vector<512x1xi32>
    %7 = arith.cmpi ne, %1, %6 : vector<512x1xi32>
    %c512_i32_3 = arith.constant 512 : i32
    %8 = vector.broadcast %c512_i32_3 : i32 to vector<512x1xi32>
    %9 = arith.cmpi slt, %5, %8 : vector<512x1xi32>
    %10 = arith.andi %7, %9 : vector<512x1xi1>
    %cst = arith.constant dense<0xFF800000> : vector<512xf32>
    %11 = vector.multi_reduction <maximumf>, %0, %cst [1] : vector<512x4xf32> to vector<512xf32>
    %12 = vector.shape_cast %11 : vector<512xf32> to vector<512x1xf32>
    %13 = vector.broadcast %12 : vector<512x1xf32> to vector<512x4xf32>
    %14 = arith.subf %0, %13 : vector<512x4xf32>
    %15 = math.exp %14 : vector<512x4xf32>
    %cst_4 = arith.constant dense<0.000000e+00> : vector<512xf32>
    %16 = vector.multi_reduction <add>, %15, %cst_4 [1] : vector<512x4xf32> to vector<512xf32>
    %17 = vector.shape_cast %16 : vector<512xf32> to vector<512x1xf32>
    %18 = math.log %17 : vector<512x1xf32>
    %19 = arith.addf %18, %12 : vector<512x1xf32>
    %20 = tpu.iota {dimensions = array<i32: 1>} : vector<512x4xi32>
    %21 = vector.broadcast %1 : vector<512x1xi32> to vector<512x4xi32>
    %22 = arith.cmpi eq, %20, %21 : vector<512x4xi32>
    %cst_5 = arith.constant 0.000000e+00 : f32
    %23 = vector.broadcast %cst_5 : f32 to vector<512x4xf32>
    %24 = arith.select %22, %0, %23 : vector<512x4xi1>, vector<512x4xf32>
    %cst_6 = arith.constant dense<0.000000e+00> : vector<512xf32>
    %25 = vector.multi_reduction <add>, %24, %cst_6 [1] : vector<512x4xf32> to vector<512xf32>
    %26 = vector.shape_cast %25 : vector<512xf32> to vector<512x1xf32>
    %27 = arith.subf %19, %26 : vector<512x1xf32>
    %cst_7 = arith.constant 0.000000e+00 : f32
    %28 = vector.broadcast %cst_7 : f32 to vector<512x1xf32>
    %29 = arith.select %10, %27, %28 : vector<512x1xi1>, vector<512x1xf32>
    %30 = vector.shape_cast %29 : vector<512x1xf32> to vector<1x512x1xf32>
    %cst_8 = arith.constant dense<0.000000e+00> : vector<1xf32>
    %31 = vector.multi_reduction <add>, %30, %cst_8 [1, 2] : vector<1x512x1xf32> to vector<1xf32>
    %32 = vector.shape_cast %31 : vector<1xf32> to vector<1x1x1xf32>
    %33 = vector.extract %32[0, 0, 0] : f32 from vector<1x1x1xf32>
    %cst_9 = arith.constant 1.000000e+00 : f32
    %cst_10 = arith.constant 0.000000e+00 : f32
    %34 = vector.broadcast %cst_9 : f32 to vector<512x1xf32>
    %35 = vector.broadcast %cst_10 : f32 to vector<512x1xf32>
    %36 = arith.select %10, %34, %35 : vector<512x1xi1>, vector<512x1xf32>
    %37 = vector.shape_cast %36 : vector<512x1xf32> to vector<1x512x1xf32>
    %cst_11 = arith.constant dense<0.000000e+00> : vector<1xf32>
    %38 = vector.multi_reduction <add>, %37, %cst_11 [1, 2] : vector<1x512x1xf32> to vector<1xf32>
    %39 = vector.shape_cast %38 : vector<1xf32> to vector<1x1x1xf32>
    %40 = vector.extract %39[0, 0, 0] : f32 from vector<1x1x1xf32>
    %41 = tpu.iota {dimensions = array<i32: 0>} : vector<8x128xi32>
    %42 = tpu.iota {dimensions = array<i32: 1>} : vector<8x128xi32>
    %c0_i32 = arith.constant 0 : i32
    %43 = vector.broadcast %c0_i32 : i32 to vector<8x128xi32>
    %44 = arith.cmpi eq, %41, %43 : vector<8x128xi32>
    %c0_i32_12 = arith.constant 0 : i32
    %45 = vector.broadcast %c0_i32_12 : i32 to vector<8x128xi32>
    %46 = arith.cmpi eq, %42, %45 : vector<8x128xi32>
    %47 = arith.andi %44, %46 : vector<8x128xi1>
    %c0_i32_13 = arith.constant 0 : i32
    %48 = vector.broadcast %c0_i32_13 : i32 to vector<8x128xi32>
    %49 = arith.cmpi eq, %41, %48 : vector<8x128xi32>
    %c1_i32 = arith.constant 1 : i32
    %50 = vector.broadcast %c1_i32 : i32 to vector<8x128xi32>
    %51 = arith.cmpi eq, %42, %50 : vector<8x128xi32>
    %52 = arith.andi %49, %51 : vector<8x128xi1>
    %cst_14 = arith.constant 0.000000e+00 : f32
    %53 = vector.broadcast %40 : f32 to vector<8x128xf32>
    %54 = vector.broadcast %cst_14 : f32 to vector<8x128xf32>
    %55 = arith.select %52, %53, %54 : vector<8x128xi1>, vector<8x128xf32>
    %56 = vector.broadcast %33 : f32 to vector<8x128xf32>
    %57 = arith.select %47, %56, %55 : vector<8x128xi1>, vector<8x128xf32>
    %58 = vector.shape_cast %57 : vector<8x128xf32> to vector<1x8x128xf32>
    %c0_15 = arith.constant 0 : index
    %c0_16 = arith.constant 0 : index
    %c0_17 = arith.constant 0 : index
    %59 = vector.load %arg3[%c0_15, %c0_16, %c0_17] : memref<1x8x128xf32, #tpu.memory_space<vmem>>, vector<1x8x128xf32>
    tpu.vector_store %arg3[%c0_15, %c0_16, %c0_17], %58 {strides = array<i32>} : memref<1x8x128xf32, #tpu.memory_space<vmem>>, vector<1x8x128xf32>,
    return
  }
  func.func @transform_0(%arg0: i32) -> (i32, i32) {
    %c0_i32 = arith.constant 0 : i32
    %c0_i32_0 = arith.constant 0 : i32
    return %arg0, %c0_i32 : i32, i32
  }
  func.func @transform_1(%arg0: i32) -> (i32, i32) {
    %c0_i32 = arith.constant 0 : i32
    %c0_i32_0 = arith.constant 0 : i32
    return %arg0, %c0_i32 : i32, i32
  }
  func.func @transform_2(%arg0: i32) -> (i32, i32, i32) {
    %c0_i32 = arith.constant 0 : i32
    %c0_i32_0 = arith.constant 0 : i32
    %c0_i32_1 = arith.constant 0 : i32
    return %arg0, %c0_i32, %c0_i32_0 : i32, i32, i32
  }
}

</mosaic_0001>

<llo_original>
// kernel: tpu_custom_call.1
$region0: #{tpu_custom_call.1}
  #allocation0 [shape = 'u32[]', space=smem, size = 0x4, offset = 0x4, fixed_abs, tag = 'smem constant byte address 0x4 - core index']
  #allocation1 [shape = 'u32[144,128]{1,0:T(1,128)}', space=vmem, size = 0x12000, scoped, tag = 'internal scratch']
  %s0 = inlined_call_operand.vmem [shape: f32[512,4], index: 0, kind: input, shape index: {}]
  %s1 = inlined_call_operand.vmem [shape: s32[512,1], index: 1, kind: input, shape index: {}]
  %s2 = inlined_call_operand.hbm [shape: f32[1,8,128], index: 2, kind: output, shape index: {}]
  %s3 = sld [smem:[#allocation0]]
  $region18: #{tpu_custom_call.1} parent=0
    _
  %s5 = ssub.s32 1, %s3
  %s6 = scalar_select 0, %s5, %s3
  $region1: #{tpu_custom_call.1} parent=0
    #allocation2 [shape = 'u8[4096]{0}', space=vmem, size = 0x1000, scoped, tag = 'output window, operand 0, single buffered']
    #allocation3 [shape = 's32[1]{0}', space=sflag, size = 0x4, scoped, tag = 'scoped memory for tpu_custom_call.1']
    %7 = vsyncpa [#allocation3], 0
    // Predicated region
    $region2: #{tpu_custom_call.1} parent=1 // pred_check
      _
    $region3: #{tpu_custom_call.1} parent=1 // pred_check_branch
      %9 = sbr.rel (0) target = $region5
    $region4: #{tpu_custom_call.1} parent=1 // pred_region
      _
    $region5: #{tpu_custom_call.1} parent=1 // pred_fallthru
      _
    // Predicated region
    $region6: #{tpu_custom_call.1} parent=1 // pred_check
      _
    $region7: #{tpu_custom_call.1} parent=1 // pred_check_branch
      %11 = sbr.rel (0) target = $region9
    $region8: #{tpu_custom_call.1} parent=1 // pred_region
      _
    $region9: #{tpu_custom_call.1} parent=1 // pred_fallthru
      _
    %v12 = vld [vmem:[%s0] sm:$0xff]
    %v13 = vld [vmem:[%s0 + $0x8] sm:$0xff]
    %v14 = vld [vmem:[%s0 + $0x10] sm:$0xff]
    %v15 = vld [vmem:[%s0 + $0x18] sm:$0xff]
    %v16 = vld [vmem:[%s0 + $0x20] sm:$0xff]
    %v17 = vld [vmem:[%s0 + $0x28] sm:$0xff]
    %v18 = vld [vmem:[%s0 + $0x30] sm:$0xff]
    %v19 = vld [vmem:[%s0 + $0x38] sm:$0xff]
    %v20 = vld [vmem:[%s0 + $0x40] sm:$0xff]
    %v21 = vld [vmem:[%s0 + $0x48] sm:$0xff]
    %v22 = vld [vmem:[%s0 + $0x50] sm:$0xff]
    %v23 = vld [vmem:[%s0 + $0x58] sm:$0xff]
    %v24 = vld [vmem:[%s0 + $0x60] sm:$0xff]
    %v25 = vld [vmem:[%s0 + $0x68] sm:$0xff]
    %v26 = vld [vmem:[%s0 + $0x70] sm:$0xff]
    %v27 = vld [vmem:[%s0 + $0x78] sm:$0xff]
    %v28 = vld [vmem:[%s0 + $0x80] sm:$0xff]
    %v29 = vld [vmem:[%s0 + $0x88] sm:$0xff]
    %v30 = vld [vmem:[%s0 + $0x90] sm:$0xff]
    %v31 = vld [vmem:[%s0 + $0x98] sm:$0xff]
    %v32 = vld [vmem:[%s0 + $0xa0] sm:$0xff]
    %v33 = vld [vmem:[%s0 + $0xa8] sm:$0xff]
    %v34 = vld [vmem:[%s0 + $0xb0] sm:$0xff]
    %v35 = vld [vmem:[%s0 + $0xb8] sm:$0xff]
    %v36 = vld [vmem:[%s0 + $0xc0] sm:$0xff]
    %v37 = vld [vmem:[%s0 + $0xc8] sm:$0xff]
    %v38 = vld [vmem:[%s0 + $0xd0] sm:$0xff]
    %v39 = vld [vmem:[%s0 + $0xd8] sm:$0xff]
    %v40 = vld [vmem:[%s0 + $0xe0] sm:$0xff]
    %v41 = vld [vmem:[%s0 + $0xe8] sm:$0xff]
    %v42 = vld [vmem:[%s0 + $0xf0] sm:$0xff]
    %v43 = vld [vmem:[%s0 + $0xf8] sm:$0xff]
    %v44 = vld [vmem:[%s0 + $0x100] sm:$0xff]
    %v45 = vld [vmem:[%s0 + $0x108] sm:$0xff]
    %v46 = vld [vmem:[%s0 + $0x110] sm:$0xff]
    %v47 = vld [vmem:[%s0 + $0x118] sm:$0xff]
    %v48 = vld [vmem:[%s0 + $0x120] sm:$0xff]
    %v49 = vld [vmem:[%s0 + $0x128] sm:$0xff]
    %v50 = vld [vmem:[%s0 + $0x130] sm:$0xff]
    %v51 = vld [vmem:[%s0 + $0x138] sm:$0xff]
    %v52 = vld [vmem:[%s0 + $0x140] sm:$0xff]
    %v53 = vld [vmem:[%s0 + $0x148] sm:$0xff]
    %v54 = vld [vmem:[%s0 + $0x150] sm:$0xff]
    %v55 = vld [vmem:[%s0 + $0x158] sm:$0xff]
    %v56 = vld [vmem:[%s0 + $0x160] sm:$0xff]
    %v57 = vld [vmem:[%s0 + $0x168] sm:$0xff]
    %v58 = vld [vmem:[%s0 + $0x170] sm:$0xff]
    %v59 = vld [vmem:[%s0 + $0x178] sm:$0xff]
    %v60 = vld [vmem:[%s0 + $0x180] sm:$0xff]
    %v61 = vld [vmem:[%s0 + $0x188] sm:$0xff]
    %v62 = vld [vmem:[%s0 + $0x190] sm:$0xff]
    %v63 = vld [vmem:[%s0 + $0x198] sm:$0xff]
    %v64 = vld [vmem:[%s0 + $0x1a0] sm:$0xff]
    %v65 = vld [vmem:[%s0 + $0x1a8] sm:$0xff]
    %v66 = vld [vmem:[%s0 + $0x1b0] sm:$0xff]
    %v67 = vld [vmem:[%s0 + $0x1b8] sm:$0xff]
    %v68 = vld [vmem:[%s0 + $0x1c0] sm:$0xff]
    %v69 = vld [vmem:[%s0 + $0x1c8] sm:$0xff]
    %v70 = vld [vmem:[%s0 + $0x1d0] sm:$0xff]
    %v71 = vld [vmem:[%s0 + $0x1d8] sm:$0xff]
    %v72 = vld [vmem:[%s0 + $0x1e0] sm:$0xff]
    %v73 = vld [vmem:[%s0 + $0x1e8] sm:$0xff]
    %v74 = vld [vmem:[%s0 + $0x1f0] sm:$0xff]
    %v75 = vld [vmem:[%s0 + $0x1f8] sm:$0xff]
    %v76 = vld [vmem:[%s1] sm:$0xff]
    %v77 = vld [vmem:[%s1 + $0x8] sm:$0xff]
    %v78 = vld [vmem:[%s1 + $0x10] sm:$0xff]
    %v79 = vld [vmem:[%s1 + $0x18] sm:$0xff]
    %v80 = vld [vmem:[%s1 + $0x20] sm:$0xff]
    %v81 = vld [vmem:[%s1 + $0x28] sm:$0xff]
    %v82 = vld [vmem:[%s1 + $0x30] sm:$0xff]
    %v83 = vld [vmem:[%s1 + $0x38] sm:$0xff]
    %v84 = vld [vmem:[%s1 + $0x40] sm:$0xff]
    %v85 = vld [vmem:[%s1 + $0x48] sm:$0xff]
    %v86 = vld [vmem:[%s1 + $0x50] sm:$0xff]
    %v87 = vld [vmem:[%s1 + $0x58] sm:$0xff]
    %v88 = vld [vmem:[%s1 + $0x60] sm:$0xff]
    %v89 = vld [vmem:[%s1 + $0x68] sm:$0xff]
    %v90 = vld [vmem:[%s1 + $0x70] sm:$0xff]
    %v91 = vld [vmem:[%s1 + $0x78] sm:$0xff]
    %v92 = vld [vmem:[%s1 + $0x80] sm:$0xff]
    %v93 = vld [vmem:[%s1 + $0x88] sm:$0xff]
    %v94 = vld [vmem:[%s1 + $0x90] sm:$0xff]
    %v95 = vld [vmem:[%s1 + $0x98] sm:$0xff]
    %v96 = vld [vmem:[%s1 + $0xa0] sm:$0xff]
    %v97 = vld [vmem:[%s1 + $0xa8] sm:$0xff]
    %v98 = vld [vmem:[%s1 + $0xb0] sm:$0xff]
    %v99 = vld [vmem:[%s1 + $0xb8] sm:$0xff]
    %v100 = vld [vmem:[%s1 + $0xc0] sm:$0xff]
    %v101 = vld [vmem:[%s1 + $0xc8] sm:$0xff]
    %v102 = vld [vmem:[%s1 + $0xd0] sm:$0xff]
    %v103 = vld [vmem:[%s1 + $0xd8] sm:$0xff]
    %v104 = vld [vmem:[%s1 + $0xe0] sm:$0xff]
    %v105 = vld [vmem:[%s1 + $0xe8] sm:$0xff]
    %v106 = vld [vmem:[%s1 + $0xf0] sm:$0xff]
    %v107 = vld [vmem:[%s1 + $0xf8] sm:$0xff]
    %v108 = vld [vmem:[%s1 + $0x100] sm:$0xff]
    %v109 = vld [vmem:[%s1 + $0x108] sm:$0xff]
    %v110 = vld [vmem:[%s1 + $0x110] sm:$0xff]
    %v111 = vld [vmem:[%s1 + $0x118] sm:$0xff]
    %v112 = vld [vmem:[%s1 + $0x120] sm:$0xff]
    %v113 = vld [vmem:[%s1 + $0x128] sm:$0xff]
    %v114 = vld [vmem:[%s1 + $0x130] sm:$0xff]
    %v115 = vld [vmem:[%s1 + $0x138] sm:$0xff]
    %v116 = vld [vmem:[%s1 + $0x140] sm:$0xff]
    %v117 = vld [vmem:[%s1 + $0x148] sm:$0xff]
    %v118 = vld [vmem:[%s1 + $0x150] sm:$0xff]
    %v119 = vld [vmem:[%s1 + $0x158] sm:$0xff]
    %v120 = vld [vmem:[%s1 + $0x160] sm:$0xff]
    %v121 = vld [vmem:[%s1 + $0x168] sm:$0xff]
    %v122 = vld [vmem:[%s1 + $0x170] sm:$0xff]
    %v123 = vld [vmem:[%s1 + $0x178] sm:$0xff]
    %v124 = vld [vmem:[%s1 + $0x180] sm:$0xff]
    %v125 = vld [vmem:[%s1 + $0x188] sm:$0xff]
    %v126 = vld [vmem:[%s1 + $0x190] sm:$0xff]
    %v127 = vld [vmem:[%s1 + $0x198] sm:$0xff]
    %v128 = vld [vmem:[%s1 + $0x1a0] sm:$0xff]
    %v129 = vld [vmem:[%s1 + $0x1a8] sm:$0xff]
    %v130 = vld [vmem:[%s1 + $0x1b0] sm:$0xff]
    %v131 = vld [vmem:[%s1 + $0x1b8] sm:$0xff]
    %v132 = vld [vmem:[%s1 + $0x1c0] sm:$0xff]
    %v133 = vld [vmem:[%s1 + $0x1c8] sm:$0xff]
    %v134 = vld [vmem:[%s1 + $0x1d0] sm:$0xff]
    %v135 = vld [vmem:[%s1 + $0x1d8] sm:$0xff]
    %v136 = vld [vmem:[%s1 + $0x1e0] sm:$0xff]
    %v137 = vld [vmem:[%s1 + $0x1e8] sm:$0xff]
    %v138 = vld [vmem:[%s1 + $0x1f0] sm:$0xff]
    %v139 = vld [vmem:[%s1 + $0x1f8] sm:$0xff]
    %v140 = vlaneseq
    %v141 = vshrl.u32 %v140, 7
    %v142 = vadd.s32 %v141, 8
    %v143 = vadd.s32 %v141, 16
    %v144 = vadd.s32 %v141, 24
    %v145 = vadd.s32 %v141, 32
    %v146 = vadd.s32 %v141, 40
    %v147 = vadd.s32 %v141, 48
    %v148 = vadd.s32 %v141, 56
    %v149 = vadd.s32 %v141, 64
    %v150 = vadd.s32 %v141, 72
    %v151 = vadd.s32 %v141, 80
    %v152 = vadd.s32 %v141, 88
    %v153 = vadd.s32 %v141, 96
    %v154 = vadd.s32 %v141, 104
    %v155 = vadd.s32 %v141, 112
    %v156 = vadd.s32 %v141, 120
    %v157 = vadd.s32 %v141, 128
    %v158 = vadd.s32 %v141, 136
    %v159 = vadd.s32 %v141, 144
    %v160 = vadd.s32 %v141, 152
    %v161 = vadd.s32 %v141, 160
    %v162 = vadd.s32 %v141, 168
    %v163 = vadd.s32 %v141, 176
    %v164 = vadd.s32 %v141, 184
    %v165 = vadd.s32 %v141, 192
    %v166 = vadd.s32 %v141, 200
    %v167 = vadd.s32 %v141, 208
    %v168 = vadd.s32 %v141, 216
    %v169 = vadd.s32 %v141, 224
    %v170 = vadd.s32 %v141, 232
    %v171 = vadd.s32 %v141, 240
    %v172 = vadd.s32 %v141, 248
    %v173 = vadd.s32 %v141, 256
    %v174 = vadd.s32 %v141, 264
    %v175 = vadd.s32 %v141, 272
    %v176 = vadd.s32 %v141, 280
    %v177 = vadd.s32 %v141, 288
    %v178 = vadd.s32 %v141, 296
    %v179 = vadd.s32 %v141, 304
    %v180 = vadd.s32 %v141, 312
    %v181 = vadd.s32 %v141, 320
    %v182 = vadd.s32 %v141, 328
    %v183 = vadd.s32 %v141, 336
    %v184 = vadd.s32 %v141, 344
    %v185 = vadd.s32 %v141, 352
    %v186 = vadd.s32 %v141, 360
    %v187 = vadd.s32 %v141, 368
    %v188 = vadd.s32 %v141, 376
    %v189 = vadd.s32 %v141, 384
    %v190 = vadd.s32 %v141, 392
    %v191 = vadd.s32 %v141, 400
    %v192 = vadd.s32 %v141, 408
    %v193 = vadd.s32 %v141, 416
    %v194 = vadd.s32 %v141, 424
    %v195 = vadd.s32 %v141, 432
    %v196 = vadd.s32 %v141, 440
    %v197 = vadd.s32 %v141, 448
    %v198 = vadd.s32 %v141, 456
    %v199 = vadd.s32 %v141, 464
    %v200 = vadd.s32 %v141, 472
    %v201 = vadd.s32 %v141, 480
    %v202 = vadd.s32 %v141, 488
    %v203 = vadd.s32 %v141, 496
    %v204 = vadd.s32 %v141, 504
    %s205 = smul.u32 0, 512
    %v206 = vstv %s205
    %v207 = vadd.s32 %v141, %v206
    %v208 = vadd.s32 %v142, %v206
    %v209 = vadd.s32 %v143, %v206
    %v210 = vadd.s32 %v144, %v206
    %v211 = vadd.s32 %v145, %v206
    %v212 = vadd.s32 %v146, %v206
    %v213 = vadd.s32 %v147, %v206
    %v214 = vadd.s32 %v148, %v206
    %v215 = vadd.s32 %v149, %v206
    %v216 = vadd.s32 %v150, %v206
    %v217 = vadd.s32 %v151, %v206
    %v218 = vadd.s32 %v152, %v206
    %v219 = vadd.s32 %v153, %v206
    %v220 = vadd.s32 %v154, %v206
    %v221 = vadd.s32 %v155, %v206
    %v222 = vadd.s32 %v156, %v206
    %v223 = vadd.s32 %v157, %v206
    %v224 = vadd.s32 %v158, %v206
    %v225 = vadd.s32 %v159, %v206
    %v226 = vadd.s32 %v160, %v206
    %v227 = vadd.s32 %v161, %v206
    %v228 = vadd.s32 %v162, %v206
    %v229 = vadd.s32 %v163, %v206
    %v230 = vadd.s32 %v164, %v206
    %v231 = vadd.s32 %v165, %v206
    %v232 = vadd.s32 %v166, %v206
    %v233 = vadd.s32 %v167, %v206
    %v234 = vadd.s32 %v168, %v206
    %v235 = vadd.s32 %v169, %v206
    %v236 = vadd.s32 %v170, %v206
    %v237 = vadd.s32 %v171, %v206
    %v238 = vadd.s32 %v172, %v206
    %v239 = vadd.s32 %v173, %v206
    %v240 = vadd.s32 %v174, %v206
    %v241 = vadd.s32 %v175, %v206
    %v242 = vadd.s32 %v176, %v206
    %v243 = vadd.s32 %v177, %v206
    %v244 = vadd.s32 %v178, %v206
    %v245 = vadd.s32 %v179, %v206
    %v246 = vadd.s32 %v180, %v206
    %v247 = vadd.s32 %v181, %v206
    %v248 = vadd.s32 %v182, %v206
    %v249 = vadd.s32 %v183, %v206
    %v250 = vadd.s32 %v184, %v206
    %v251 = vadd.s32 %v185, %v206
    %v252 = vadd.s32 %v186, %v206
    %v253 = vadd.s32 %v187, %v206
    %v254 = vadd.s32 %v188, %v206
    %v255 = vadd.s32 %v189, %v206
    %v256 = vadd.s32 %v190, %v206
    %v257 = vadd.s32 %v191, %v206
    %v258 = vadd.s32 %v192, %v206
    %v259 = vadd.s32 %v193, %v206
    %v260 = vadd.s32 %v194, %v206
    %v261 = vadd.s32 %v195, %v206
    %v262 = vadd.s32 %v196, %v206
    %v263 = vadd.s32 %v197, %v206
    %v264 = vadd.s32 %v198, %v206
    %v265 = vadd.s32 %v199, %v206
    %v266 = vadd.s32 %v200, %v206
    %v267 = vadd.s32 %v201, %v206
    %v268 = vadd.s32 %v202, %v206
    %v269 = vadd.s32 %v203, %v206
    %v270 = vadd.s32 %v204, %v206
    %vm271 = vcmp.ne.s32.totalorder %v76, 255
    %vm272 = vcmp.ne.s32.totalorder %v77, 255
    %vm273 = vcmp.ne.s32.totalorder %v78, 255
    %vm274 = vcmp.ne.s32.totalorder %v79, 255
    %vm275 = vcmp.ne.s32.totalorder %v80, 255
    %vm276 = vcmp.ne.s32.totalorder %v81, 255
    %vm277 = vcmp.ne.s32.totalorder %v82, 255
    %vm278 = vcmp.ne.s32.totalorder %v83, 255
    %vm279 = vcmp.ne.s32.totalorder %v84, 255
    %vm280 = vcmp.ne.s32.totalorder %v85, 255
    %vm281 = vcmp.ne.s32.totalorder %v86, 255
    %vm282 = vcmp.ne.s32.totalorder %v87, 255
    %vm283 = vcmp.ne.s32.totalorder %v88, 255
    %vm284 = vcmp.ne.s32.totalorder %v89, 255
    %vm285 = vcmp.ne.s32.totalorder %v90, 255
    %vm286 = vcmp.ne.s32.totalorder %v91, 255
    %vm287 = vcmp.ne.s32.totalorder %v92, 255
    %vm288 = vcmp.ne.s32.totalorder %v93, 255
    %vm289 = vcmp.ne.s32.totalorder %v94, 255
    %vm290 = vcmp.ne.s32.totalorder %v95, 255
    %vm291 = vcmp.ne.s32.totalorder %v96, 255
    %vm292 = vcmp.ne.s32.totalorder %v97, 255
    %vm293 = vcmp.ne.s32.totalorder %v98, 255
    %vm294 = vcmp.ne.s32.totalorder %v99, 255
    %vm295 = vcmp.ne.s32.totalorder %v100, 255
    %vm296 = vcmp.ne.s32.totalorder %v101, 255
    %vm297 = vcmp.ne.s32.totalorder %v102, 255
    %vm298 = vcmp.ne.s32.totalorder %v103, 255
    %vm299 = vcmp.ne.s32.totalorder %v104, 255
    %vm300 = vcmp.ne.s32.totalorder %v105, 255
    %vm301 = vcmp.ne.s32.totalorder %v106, 255
    %vm302 = vcmp.ne.s32.totalorder %v107, 255
    %vm303 = vcmp.ne.s32.totalorder %v108, 255
    %vm304 = vcmp.ne.s32.totalorder %v109, 255
    %vm305 = vcmp.ne.s32.totalorder %v110, 255
    %vm306 = vcmp.ne.s32.totalorder %v111, 255
    %vm307 = vcmp.ne.s32.totalorder %v112, 255
    %vm308 = vcmp.ne.s32.totalorder %v113, 255
    %vm309 = vcmp.ne.s32.totalorder %v114, 255
    %vm310 = vcmp.ne.s32.totalorder %v115, 255
    %vm311 = vcmp.ne.s32.totalorder %v116, 255
    %vm312 = vcmp.ne.s32.totalorder %v117, 255
    %vm313 = vcmp.ne.s32.totalorder %v118, 255
    %vm314 = vcmp.ne.s32.totalorder %v119, 255
    %vm315 = vcmp.ne.s32.totalorder %v120, 255
    %vm316 = vcmp.ne.s32.totalorder %v121, 255
    %vm317 = vcmp.ne.s32.totalorder %v122, 255
    %vm318 = vcmp.ne.s32.totalorder %v123, 255
    %vm319 = vcmp.ne.s32.totalorder %v124, 255
    %vm320 = vcmp.ne.s32.totalorder %v125, 255
    %vm321 = vcmp.ne.s32.totalorder %v126, 255
    %vm322 = vcmp.ne.s32.totalorder %v127, 255
    %vm323 = vcmp.ne.s32.totalorder %v128, 255
    %vm324 = vcmp.ne.s32.totalorder %v129, 255
    %vm325 = vcmp.ne.s32.totalorder %v130, 255
    %vm326 = vcmp.ne.s32.totalorder %v131, 255
    %vm327 = vcmp.ne.s32.totalorder %v132, 255
    %vm328 = vcmp.ne.s32.totalorder %v133, 255
    %vm329 = vcmp.ne.s32.totalorder %v134, 255
    %vm330 = vcmp.ne.s32.totalorder %v135, 255
    %vm331 = vcmp.ne.s32.totalorder %v136, 255
    %vm332 = vcmp.ne.s32.totalorder %v137, 255
    %vm333 = vcmp.ne.s32.totalorder %v138, 255
    %vm334 = vcmp.ne.s32.totalorder %v139, 255
    %vm335 = vcmp.lt.s32.totalorder %v207, 512
    %vm336 = vcmp.lt.s32.totalorder %v208, 512
    %vm337 = vcmp.lt.s32.totalorder %v209, 512
    %vm338 = vcmp.lt.s32.totalorder %v210, 512
    %vm339 = vcmp.lt.s32.totalorder %v211, 512
    %vm340 = vcmp.lt.s32.totalorder %v212, 512
    %vm341 = vcmp.lt.s32.totalorder %v213, 512
    %vm342 = vcmp.lt.s32.totalorder %v214, 512
    %vm343 = vcmp.lt.s32.totalorder %v215, 512
    %vm344 = vcmp.lt.s32.totalorder %v216, 512
    %vm345 = vcmp.lt.s32.totalorder %v217, 512
    %vm346 = vcmp.lt.s32.totalorder %v218, 512
    %vm347 = vcmp.lt.s32.totalorder %v219, 512
    %vm348 = vcmp.lt.s32.totalorder %v220, 512
    %vm349 = vcmp.lt.s32.totalorder %v221, 512
    %vm350 = vcmp.lt.s32.totalorder %v222, 512
    %vm351 = vcmp.lt.s32.totalorder %v223, 512
    %vm352 = vcmp.lt.s32.totalorder %v224, 512
    %vm353 = vcmp.lt.s32.totalorder %v225, 512
    %vm354 = vcmp.lt.s32.totalorder %v226, 512
    %vm355 = vcmp.lt.s32.totalorder %v227, 512
    %vm356 = vcmp.lt.s32.totalorder %v228, 512
    %vm357 = vcmp.lt.s32.totalorder %v229, 512
    %vm358 = vcmp.lt.s32.totalorder %v230, 512
    %vm359 = vcmp.lt.s32.totalorder %v231, 512
    %vm360 = vcmp.lt.s32.totalorder %v232, 512
    %vm361 = vcmp.lt.s32.totalorder %v233, 512
    %vm362 = vcmp.lt.s32.totalorder %v234, 512
    %vm363 = vcmp.lt.s32.totalorder %v235, 512
    %vm364 = vcmp.lt.s32.totalorder %v236, 512
    %vm365 = vcmp.lt.s32.totalorder %v237, 512
    %vm366 = vcmp.lt.s32.totalorder %v238, 512
    %vm367 = vcmp.lt.s32.totalorder %v239, 512
    %vm368 = vcmp.lt.s32.totalorder %v240, 512
    %vm369 = vcmp.lt.s32.totalorder %v241, 512
    %vm370 = vcmp.lt.s32.totalorder %v242, 512
    %vm371 = vcmp.lt.s32.totalorder %v243, 512
    %vm372 = vcmp.lt.s32.totalorder %v244, 512
    %vm373 = vcmp.lt.s32.totalorder %v245, 512
    %vm374 = vcmp.lt.s32.totalorder %v246, 512
    %vm375 = vcmp.lt.s32.totalorder %v247, 512
    %vm376 = vcmp.lt.s32.totalorder %v248, 512
    %vm377 = vcmp.lt.s32.totalorder %v249, 512
    %vm378 = vcmp.lt.s32.totalorder %v250, 512
    %vm379 = vcmp.lt.s32.totalorder %v251, 512
    %vm380 = vcmp.lt.s32.totalorder %v252, 512
    %vm381 = vcmp.lt.s32.totalorder %v253, 512
    %vm382 = vcmp.lt.s32.totalorder %v254, 512
    %vm383 = vcmp.lt.s32.totalorder %v255, 512
    %vm384 = vcmp.lt.s32.totalorder %v256, 512
    %vm385 = vcmp.lt.s32.totalorder %v257, 512
    %vm386 = vcmp.lt.s32.totalorder %v258, 512
    %vm387 = vcmp.lt.s32.totalorder %v259, 512
    %vm388 = vcmp.lt.s32.totalorder %v260, 512
    %vm389 = vcmp.lt.s32.totalorder %v261, 512
    %vm390 = vcmp.lt.s32.totalorder %v262, 512
    %vm391 = vcmp.lt.s32.totalorder %v263, 512
    %vm392 = vcmp.lt.s32.totalorder %v264, 512
    %vm393 = vcmp.lt.s32.totalorder %v265, 512
    %vm394 = vcmp.lt.s32.totalorder %v266, 512
    %vm395 = vcmp.lt.s32.totalorder %v267, 512
    %vm396 = vcmp.lt.s32.totalorder %v268, 512
    %vm397 = vcmp.lt.s32.totalorder %v269, 512
    %vm398 = vcmp.lt.s32.totalorder %v270, 512
    %vm399 = vmand %vm271, %vm335
    %vm400 = vmand %vm272, %vm336
    %vm401 = vmand %vm273, %vm337
    %vm402 = vmand %vm274, %vm338
    %vm403 = vmand %vm275, %vm339
    %vm404 = vmand %vm276, %vm340
    %vm405 = vmand %vm277, %vm341
    %vm406 = vmand %vm278, %vm342
    %vm407 = vmand %vm279, %vm343
    %vm408 = vmand %vm280, %vm344
    %vm409 = vmand %vm281, %vm345
    %vm410 = vmand %vm282, %vm346
    %vm411 = vmand %vm283, %vm347
    %vm412 = vmand %vm284, %vm348
    %vm413 = vmand %vm285, %vm349
    %vm414 = vmand %vm286, %vm350
    %vm415 = vmand %vm287, %vm351
    %vm416 = vmand %vm288, %vm352
    %vm417 = vmand %vm289, %vm353
    %vm418 = vmand %vm290, %vm354
    %vm419 = vmand %vm291, %vm355
    %vm420 = vmand %vm292, %vm356
    %vm421 = vmand %vm293, %vm357
    %vm422 = vmand %vm294, %vm358
    %vm423 = vmand %vm295, %vm359
    %vm424 = vmand %vm296, %vm360
    %vm425 = vmand %vm297, %vm361
    %vm426 = vmand %vm298, %vm362
    %vm427 = vmand %vm299, %vm363
    %vm428 = vmand %vm300, %vm364
    %vm429 = vmand %vm301, %vm365
    %vm430 = vmand %vm302, %vm366
    %vm431 = vmand %vm303, %vm367
    %vm432 = vmand %vm304, %vm368
    %vm433 = vmand %vm305, %vm369
    %vm434 = vmand %vm306, %vm370
    %vm435 = vmand %vm307, %vm371
    %vm436 = vmand %vm308, %vm372
    %vm437 = vmand %vm309, %vm373
    %vm438 = vmand %vm310, %vm374
    %vm439 = vmand %vm311, %vm375
    %vm440 = vmand %vm312, %vm376
    %vm441 = vmand %vm313, %vm377
    %vm442 = vmand %vm314, %vm378
    %vm443 = vmand %vm315, %vm379
    %vm444 = vmand %vm316, %vm380
    %vm445 = vmand %vm317, %vm381
    %vm446 = vmand %vm318, %vm382
    %vm447 = vmand %vm319, %vm383
    %vm448 = vmand %vm320, %vm384
    %vm449 = vmand %vm321, %vm385
    %vm450 = vmand %vm322, %vm386
    %vm451 = vmand %vm323, %vm387
    %vm452 = vmand %vm324, %vm388
    %vm453 = vmand %vm325, %vm389
    %vm454 = vmand %vm326, %vm390
    %vm455 = vmand %vm327, %vm391
    %vm456 = vmand %vm328, %vm392
    %vm457 = vmand %vm329, %vm393
    %vm458 = vmand %vm330, %vm394
    %vm459 = vmand %vm331, %vm395
    %vm460 = vmand %vm332, %vm396
    %vm461 = vmand %vm333, %vm397
    %vm462 = vmand %vm334, %vm398
    %vm463 = vcmask 31744
    %v464 = vsel %vm463, %v12, -inf
    %465 = vmax.xlane.f32.xlu0 %v464
    %v466 = vpop.xlane.xlu0 %465
    %v467 = vsel %vm463, %v13, -inf
    %468 = vmax.xlane.f32.xlu0 %v467
    %v469 = vpop.xlane.xlu0 %468
    %v470 = vsel %vm463, %v14, -inf
    %471 = vmax.xlane.f32.xlu0 %v470
    %v472 = vpop.xlane.xlu0 %471
    %v473 = vsel %vm463, %v15, -inf
    %474 = vmax.xlane.f32.xlu0 %v473
    %v475 = vpop.xlane.xlu0 %474
    %v476 = vsel %vm463, %v16, -inf
    %477 = vmax.xlane.f32.xlu0 %v476
    %v478 = vpop.xlane.xlu0 %477
    %v479 = vsel %vm463, %v17, -inf
    %480 = vmax.xlane.f32.xlu0 %v479
    %v481 = vpop.xlane.xlu0 %480
    %v482 = vsel %vm463, %v18, -inf
    %483 = vmax.xlane.f32.xlu0 %v482
    %v484 = vpop.xlane.xlu0 %483
    %v485 = vsel %vm463, %v19, -inf
    %486 = vmax.xlane.f32.xlu0 %v485
    %v487 = vpop.xlane.xlu0 %486
    %v488 = vsel %vm463, %v20, -inf
    %489 = vmax.xlane.f32.xlu0 %v488
    %v490 = vpop.xlane.xlu0 %489
    %v491 = vsel %vm463, %v21, -inf
    %492 = vmax.xlane.f32.xlu0 %v491
    %v493 = vpop.xlane.xlu0 %492
    %v494 = vsel %vm463, %v22, -inf
    %495 = vmax.xlane.f32.xlu0 %v494
    %v496 = vpop.xlane.xlu0 %495
    %v497 = vsel %vm463, %v23, -inf
    %498 = vmax.xlane.f32.xlu0 %v497
    %v499 = vpop.xlane.xlu0 %498
    %v500 = vsel %vm463, %v24, -inf
    %501 = vmax.xlane.f32.xlu0 %v500
    %v502 = vpop.xlane.xlu0 %501
    %v503 = vsel %vm463, %v25, -inf
    %504 = vmax.xlane.f32.xlu0 %v503
    %v505 = vpop.xlane.xlu0 %504
    %v506 = vsel %vm463, %v26, -inf
    %507 = vmax.xlane.f32.xlu0 %v506
    %v508 = vpop.xlane.xlu0 %507
    %v509 = vsel %vm463, %v27, -inf
    %510 = vmax.xlane.f32.xlu0 %v509
    %v511 = vpop.xlane.xlu0 %510
    %v512 = vsel %vm463, %v28, -inf
    %513 = vmax.xlane.f32.xlu0 %v512
    %v514 = vpop.xlane.xlu0 %513
    %v515 = vsel %vm463, %v29, -inf
    %516 = vmax.xlane.f32.xlu0 %v515
    %v517 = vpop.xlane.xlu0 %516
    %v518 = vsel %vm463, %v30, -inf
    %519 = vmax.xlane.f32.xlu0 %v518
    %v520 = vpop.xlane.xlu0 %519
    %v521 = vsel %vm463, %v31, -inf
    %522 = vmax.xlane.f32.xlu0 %v521
    %v523 = vpop.xlane.xlu0 %522
    %v524 = vsel %vm463, %v32, -inf
    %525 = vmax.xlane.f32.xlu0 %v524
    %v526 = vpop.xlane.xlu0 %525
    %v527 = vsel %vm463, %v33, -inf
    %528 = vmax.xlane.f32.xlu0 %v527
    %v529 = vpop.xlane.xlu0 %528
    %v530 = vsel %vm463, %v34, -inf
    %531 = vmax.xlane.f32.xlu0 %v530
    %v532 = vpop.xlane.xlu0 %531
    %v533 = vsel %vm463, %v35, -inf
    %534 = vmax.xlane.f32.xlu0 %v533
    %v535 = vpop.xlane.xlu0 %534
    %v536 = vsel %vm463, %v36, -inf
    %537 = vmax.xlane.f32.xlu0 %v536
    %v538 = vpop.xlane.xlu0 %537
    %v539 = vsel %vm463, %v37, -inf
    %540 = vmax.xlane.f32.xlu0 %v539
    %v541 = vpop.xlane.xlu0 %540
    %v542 = vsel %vm463, %v38, -inf
    %543 = vmax.xlane.f32.xlu0 %v542
    %v544 = vpop.xlane.xlu0 %543
    %v545 = vsel %vm463, %v39, -inf
    %546 = vmax.xlane.f32.xlu0 %v545
    %v547 = vpop.xlane.xlu0 %546
    %v548 = vsel %vm463, %v40, -inf
    %549 = vmax.xlane.f32.xlu0 %v548
    %v550 = vpop.xlane.xlu0 %549
    %v551 = vsel %vm463, %v41, -inf
    %552 = vmax.xlane.f32.xlu0 %v551
    %v553 = vpop.xlane.xlu0 %552
    %v554 = vsel %vm463, %v42, -inf
    %555 = vmax.xlane.f32.xlu0 %v554
    %v556 = vpop.xlane.xlu0 %555
    %v557 = vsel %vm463, %v43, -inf
    %558 = vmax.xlane.f32.xlu0 %v557
    %v559 = vpop.xlane.xlu0 %558
    %v560 = vsel %vm463, %v44, -inf
    %561 = vmax.xlane.f32.xlu0 %v560
    %v562 = vpop.xlane.xlu0 %561
    %v563 = vsel %vm463, %v45, -inf
    %564 = vmax.xlane.f32.xlu0 %v563
    %v565 = vpop.xlane.xlu0 %564
    %v566 = vsel %vm463, %v46, -inf
    %567 = vmax.xlane.f32.xlu0 %v566
    %v568 = vpop.xlane.xlu0 %567
    %v569 = vsel %vm463, %v47, -inf
    %570 = vmax.xlane.f32.xlu0 %v569
    %v571 = vpop.xlane.xlu0 %570
    %v572 = vsel %vm463, %v48, -inf
    %573 = vmax.xlane.f32.xlu0 %v572
    %v574 = vpop.xlane.xlu0 %573
    %v575 = vsel %vm463, %v49, -inf
    %576 = vmax.xlane.f32.xlu0 %v575
    %v577 = vpop.xlane.xlu0 %576
    %v578 = vsel %vm463, %v50, -inf
    %579 = vmax.xlane.f32.xlu0 %v578
    %v580 = vpop.xlane.xlu0 %579
    %v581 = vsel %vm463, %v51, -inf
    %582 = vmax.xlane.f32.xlu0 %v581
    %v583 = vpop.xlane.xlu0 %582
    %v584 = vsel %vm463, %v52, -inf
    %585 = vmax.xlane.f32.xlu0 %v584
    %v586 = vpop.xlane.xlu0 %585
    %v587 = vsel %vm463, %v53, -inf
    %588 = vmax.xlane.f32.xlu0 %v587
    %v589 = vpop.xlane.xlu0 %588
    %v590 = vsel %vm463, %v54, -inf
    %591 = vmax.xlane.f32.xlu0 %v590
    %v592 = vpop.xlane.xlu0 %591
    %v593 = vsel %vm463, %v55, -inf
    %594 = vmax.xlane.f32.xlu0 %v593
    %v595 = vpop.xlane.xlu0 %594
    %v596 = vsel %vm463, %v56, -inf
    %597 = vmax.xlane.f32.xlu0 %v596
    %v598 = vpop.xlane.xlu0 %597
    %v599 = vsel %vm463, %v57, -inf
    %600 = vmax.xlane.f32.xlu0 %v599
    %v601 = vpop.xlane.xlu0 %600
    %v602 = vsel %vm463, %v58, -inf
    %603 = vmax.xlane.f32.xlu0 %v602
    %v604 = vpop.xlane.xlu0 %603
    %v605 = vsel %vm463, %v59, -inf
    %606 = vmax.xlane.f32.xlu0 %v605
    %v607 = vpop.xlane.xlu0 %606
    %v608 = vsel %vm463, %v60, -inf
    %609 = vmax.xlane.f32.xlu0 %v608
    %v610 = vpop.xlane.xlu0 %609
    %v611 = vsel %vm463, %v61, -inf
    %612 = vmax.xlane.f32.xlu0 %v611
    %v613 = vpop.xlane.xlu0 %612
    %v614 = vsel %vm463, %v62, -inf
    %615 = vmax.xlane.f32.xlu0 %v614
    %v616 = vpop.xlane.xlu0 %615
    %v617 = vsel %vm463, %v63, -inf
    %618 = vmax.xlane.f32.xlu0 %v617
    %v619 = vpop.xlane.xlu0 %618
    %v620 = vsel %vm463, %v64, -inf
    %621 = vmax.xlane.f32.xlu0 %v620
    %v622 = vpop.xlane.xlu0 %621
    %v623 = vsel %vm463, %v65, -inf
    %624 = vmax.xlane.f32.xlu0 %v623
    %v625 = vpop.xlane.xlu0 %624
    %v626 = vsel %vm463, %v66, -inf
    %627 = vmax.xlane.f32.xlu0 %v626
    %v628 = vpop.xlane.xlu0 %627
    %v629 = vsel %vm463, %v67, -inf
    %630 = vmax.xlane.f32.xlu0 %v629
    %v631 = vpop.xlane.xlu0 %630
    %v632 = vsel %vm463, %v68, -inf
    %633 = vmax.xlane.f32.xlu0 %v632
    %v634 = vpop.xlane.xlu0 %633
    %v635 = vsel %vm463, %v69, -inf
    %636 = vmax.xlane.f32.xlu0 %v635
    %v637 = vpop.xlane.xlu0 %636
    %v638 = vsel %vm463, %v70, -inf
    %639 = vmax.xlane.f32.xlu0 %v638
    %v640 = vpop.xlane.xlu0 %639
    %v641 = vsel %vm463, %v71, -inf
    %642 = vmax.xlane.f32.xlu0 %v641
    %v643 = vpop.xlane.xlu0 %642
    %v644 = vsel %vm463, %v72, -inf
    %645 = vmax.xlane.f32.xlu0 %v644
    %v646 = vpop.xlane.xlu0 %645
    %v647 = vsel %vm463, %v73, -inf
    %648 = vmax.xlane.f32.xlu0 %v647
    %v649 = vpop.xlane.xlu0 %648
    %v650 = vsel %vm463, %v74, -inf
    %651 = vmax.xlane.f32.xlu0 %v650
    %v652 = vpop.xlane.xlu0 %651
    %v653 = vsel %vm463, %v75, -inf
    %654 = vmax.xlane.f32.xlu0 %v653
    %v655 = vpop.xlane.xlu0 %654
    %v656 = vsub.f32 %v12, %v466
    %v657 = vsub.f32 %v13, %v469
    %v658 = vsub.f32 %v14, %v472
    %v659 = vsub.f32 %v15, %v475
    %v660 = vsub.f32 %v16, %v478
    %v661 = vsub.f32 %v17, %v481
    %v662 = vsub.f32 %v18, %v484
    %v663 = vsub.f32 %v19, %v487
    %v664 = vsub.f32 %v20, %v490
    %v665 = vsub.f32 %v21, %v493
    %v666 = vsub.f32 %v22, %v496
    %v667 = vsub.f32 %v23, %v499
    %v668 = vsub.f32 %v24, %v502
    %v669 = vsub.f32 %v25, %v505
    %v670 = vsub.f32 %v26, %v508
    %v671 = vsub.f32 %v27, %v511
    %v672 = vsub.f32 %v28, %v514
    %v673 = vsub.f32 %v29, %v517
    %v674 = vsub.f32 %v30, %v520
    %v675 = vsub.f32 %v31, %v523
    %v676 = vsub.f32 %v32, %v526
    %v677 = vsub.f32 %v33, %v529
    %v678 = vsub.f32 %v34, %v532
    %v679 = vsub.f32 %v35, %v535
    %v680 = vsub.f32 %v36, %v538
    %v681 = vsub.f32 %v37, %v541
    %v682 = vsub.f32 %v38, %v544
    %v683 = vsub.f32 %v39, %v547
    %v684 = vsub.f32 %v40, %v550
    %v685 = vsub.f32 %v41, %v553
    %v686 = vsub.f32 %v42, %v556
    %v687 = vsub.f32 %v43, %v559
    %v688 = vsub.f32 %v44, %v562
    %v689 = vsub.f32 %v45, %v565
    %v690 = vsub.f32 %v46, %v568
    %v691 = vsub.f32 %v47, %v571
    %v692 = vsub.f32 %v48, %v574
    %v693 = vsub.f32 %v49, %v577
    %v694 = vsub.f32 %v50, %v580
    %v695 = vsub.f32 %v51, %v583
    %v696 = vsub.f32 %v52, %v586
    %v697 = vsub.f32 %v53, %v589
    %v698 = vsub.f32 %v54, %v592
    %v699 = vsub.f32 %v55, %v595
    %v700 = vsub.f32 %v56, %v598
    %v701 = vsub.f32 %v57, %v601
    %v702 = vsub.f32 %v58, %v604
    %v703 = vsub.f32 %v59, %v607
    %v704 = vsub.f32 %v60, %v610
    %v705 = vsub.f32 %v61, %v613
    %v706 = vsub.f32 %v62, %v616
    %v707 = vsub.f32 %v63, %v619
    %v708 = vsub.f32 %v64, %v622
    %v709 = vsub.f32 %v65, %v625
    %v710 = vsub.f32 %v66, %v628
    %v711 = vsub.f32 %v67, %v631
    %v712 = vsub.f32 %v68, %v634
    %v713 = vsub.f32 %v69, %v637
    %v714 = vsub.f32 %v70, %v640
    %v715 = vsub.f32 %v71, %v643
    %v716 = vsub.f32 %v72, %v646
    %v717 = vsub.f32 %v73, %v649
    %v718 = vsub.f32 %v74, %v652
    %v719 = vsub.f32 %v75, %v655
    %v720 = vmul.f32 %v656, 1.442695
    %v721 = vpow.pop %v720
    %v722 = vmul.f32 %v657, 1.442695
    %v723 = vpow.pop %v722
    %v724 = vmul.f32 %v658, 1.442695
    %v725 = vpow.pop %v724
    %v726 = vmul.f32 %v659, 1.442695
    %v727 = vpow.pop %v726
    %v728 = vmul.f32 %v660, 1.442695
    %v729 = vpow.pop %v728
    %v730 = vmul.f32 %v661, 1.442695
    %v731 = vpow.pop %v730
    %v732 = vmul.f32 %v662, 1.442695
    %v733 = vpow.pop %v732
    %v734 = vmul.f32 %v663, 1.442695
    %v735 = vpow.pop %v734
    %v736 = vmul.f32 %v664, 1.442695
    %v737 = vpow.pop %v736
    %v738 = vmul.f32 %v665, 1.442695
    %v739 = vpow.pop %v738
    %v740 = vmul.f32 %v666, 1.442695
    %v741 = vpow.pop %v740
    %v742 = vmul.f32 %v667, 1.442695
    %v743 = vpow.pop %v742
    %v744 = vmul.f32 %v668, 1.442695
    %v745 = vpow.pop %v744
    %v746 = vmul.f32 %v669, 1.442695
    %v747 = vpow.pop %v746
    %v748 = vmul.f32 %v670, 1.442695
    %v749 = vpow.pop %v748
    %v750 = vmul.f32 %v671, 1.442695
    %v751 = vpow.pop %v750
    %v752 = vmul.f32 %v672, 1.442695
    %v753 = vpow.pop %v752
    %v754 = vmul.f32 %v673, 1.442695
    %v755 = vpow.pop %v754
    %v756 = vmul.f32 %v674, 1.442695
    %v757 = vpow.pop %v756
    %v758 = vmul.f32 %v675, 1.442695
    %v759 = vpow.pop %v758
    %v760 = vmul.f32 %v676, 1.442695
    %v761 = vpow.pop %v760
    %v762 = vmul.f32 %v677, 1.442695
    %v763 = vpow.pop %v762
    %v764 = vmul.f32 %v678, 1.442695
    %v765 = vpow.pop %v764
    %v766 = vmul.f32 %v679, 1.442695
    %v767 = vpow.pop %v766
    %v768 = vmul.f32 %v680, 1.442695
    %v769 = vpow.pop %v768
    %v770 = vmul.f32 %v681, 1.442695
    %v771 = vpow.pop %v770
    %v772 = vmul.f32 %v682, 1.442695
    %v773 = vpow.pop %v772
    %v774 = vmul.f32 %v683, 1.442695
    %v775 = vpow.pop %v774
    %v776 = vmul.f32 %v684, 1.442695
    %v777 = vpow.pop %v776
    %v778 = vmul.f32 %v685, 1.442695
    %v779 = vpow.pop %v778
    %v780 = vmul.f32 %v686, 1.442695
    %v781 = vpow.pop %v780
    %v782 = vmul.f32 %v687, 1.442695
    %v783 = vpow.pop %v782
    %v784 = vmul.f32 %v688, 1.442695
    %v785 = vpow.pop %v784
    %v786 = vmul.f32 %v689, 1.442695
    %v787 = vpow.pop %v786
    %v788 = vmul.f32 %v690, 1.442695
    %v789 = vpow.pop %v788
    %v790 = vmul.f32 %v691, 1.442695
    %v791 = vpow.pop %v790
    %v792 = vmul.f32 %v692, 1.442695
    %v793 = vpow.pop %v792
    %v794 = vmul.f32 %v693, 1.442695
    %v795 = vpow.pop %v794
    %v796 = vmul.f32 %v694, 1.442695
    %v797 = vpow.pop %v796
    %v798 = vmul.f32 %v695, 1.442695
    %v799 = vpow.pop %v798
    %v800 = vmul.f32 %v696, 1.442695
    %v801 = vpow.pop %v800
    %v802 = vmul.f32 %v697, 1.442695
    %v803 = vpow.pop %v802
    %v804 = vmul.f32 %v698, 1.442695
    %v805 = vpow.pop %v804
    %v806 = vmul.f32 %v699, 1.442695
    %v807 = vpow.pop %v806
    %v808 = vmul.f32 %v700, 1.442695
    %v809 = vpow.pop %v808
    %v810 = vmul.f32 %v701, 1.442695
    %v811 = vpow.pop %v810
    %v812 = vmul.f32 %v702, 1.442695
    %v813 = vpow.pop %v812
    %v814 = vmul.f32 %v703, 1.442695
    %v815 = vpow.pop %v814
    %v816 = vmul.f32 %v704, 1.442695
    %v817 = vpow.pop %v816
    %v818 = vmul.f32 %v705, 1.442695
    %v819 = vpow.pop %v818
    %v820 = vmul.f32 %v706, 1.442695
    %v821 = vpow.pop %v820
    %v822 = vmul.f32 %v707, 1.442695
    %v823 = vpow.pop %v822
    %v824 = vmul.f32 %v708, 1.442695
    %v825 = vpow.pop %v824
    %v826 = vmul.f32 %v709, 1.442695
    %v827 = vpow.pop %v826
    %v828 = vmul.f32 %v710, 1.442695
    %v829 = vpow.pop %v828
    %v830 = vmul.f32 %v711, 1.442695
    %v831 = vpow.pop %v830
    %v832 = vmul.f32 %v712, 1.442695
    %v833 = vpow.pop %v832
    %v834 = vmul.f32 %v713, 1.442695
    %v835 = vpow.pop %v834
    %v836 = vmul.f32 %v714, 1.442695
    %v837 = vpow.pop %v836
    %v838 = vmul.f32 %v715, 1.442695
    %v839 = vpow.pop %v838
    %v840 = vmul.f32 %v716, 1.442695
    %v841 = vpow.pop %v840
    %v842 = vmul.f32 %v717, 1.442695
    %v843 = vpow.pop %v842
    %v844 = vmul.f32 %v718, 1.442695
    %v845 = vpow.pop %v844
    %v846 = vmul.f32 %v719, 1.442695
    %v847 = vpow.pop %v846
    %v848 = vsel %vm463, %v721, 0.0
    %849 = vadd.xlane.f32.xlu0 %v848
    %v850 = vpop.xlane.xlu0 %849
    %v851 = vsel %vm463, %v723, 0.0
    %852 = vadd.xlane.f32.xlu0 %v851
    %v853 = vpop.xlane.xlu0 %852
    %v854 = vsel %vm463, %v725, 0.0
    %855 = vadd.xlane.f32.xlu0 %v854
    %v856 = vpop.xlane.xlu0 %855
    %v857 = vsel %vm463, %v727, 0.0
    %858 = vadd.xlane.f32.xlu0 %v857
    %v859 = vpop.xlane.xlu0 %858
    %v860 = vsel %vm463, %v729, 0.0
    %861 = vadd.xlane.f32.xlu0 %v860
    %v862 = vpop.xlane.xlu0 %861
    %v863 = vsel %vm463, %v731, 0.0
    %864 = vadd.xlane.f32.xlu0 %v863
    %v865 = vpop.xlane.xlu0 %864
    %v866 = vsel %vm463, %v733, 0.0
    %867 = vadd.xlane.f32.xlu0 %v866
    %v868 = vpop.xlane.xlu0 %867
    %v869 = vsel %vm463, %v735, 0.0
    %870 = vadd.xlane.f32.xlu0 %v869
    %v871 = vpop.xlane.xlu0 %870
    %v872 = vsel %vm463, %v737, 0.0
    %873 = vadd.xlane.f32.xlu0 %v872
    %v874 = vpop.xlane.xlu0 %873
    %v875 = vsel %vm463, %v739, 0.0
    %876 = vadd.xlane.f32.xlu0 %v875
    %v877 = vpop.xlane.xlu0 %876
    %v878 = vsel %vm463, %v741, 0.0
    %879 = vadd.xlane.f32.xlu0 %v878
    %v880 = vpop.xlane.xlu0 %879
    %v881 = vsel %vm463, %v743, 0.0
    %882 = vadd.xlane.f32.xlu0 %v881
    %v883 = vpop.xlane.xlu0 %882
    %v884 = vsel %vm463, %v745, 0.0
    %885 = vadd.xlane.f32.xlu0 %v884
    %v886 = vpop.xlane.xlu0 %885
    %v887 = vsel %vm463, %v747, 0.0
    %888 = vadd.xlane.f32.xlu0 %v887
    %v889 = vpop.xlane.xlu0 %888
    %v890 = vsel %vm463, %v749, 0.0
    %891 = vadd.xlane.f32.xlu0 %v890
    %v892 = vpop.xlane.xlu0 %891
    %v893 = vsel %vm463, %v751, 0.0
    %894 = vadd.xlane.f32.xlu0 %v893
    %v895 = vpop.xlane.xlu0 %894
    %v896 = vsel %vm463, %v753, 0.0
    %897 = vadd.xlane.f32.xlu0 %v896
    %v898 = vpop.xlane.xlu0 %897
    %v899 = vsel %vm463, %v755, 0.0
    %900 = vadd.xlane.f32.xlu0 %v899
    %v901 = vpop.xlane.xlu0 %900
    %v902 = vsel %vm463, %v757, 0.0
    %903 = vadd.xlane.f32.xlu0 %v902
    %v904 = vpop.xlane.xlu0 %903
    %v905 = vsel %vm463, %v759, 0.0
    %906 = vadd.xlane.f32.xlu0 %v905
    %v907 = vpop.xlane.xlu0 %906
    %v908 = vsel %vm463, %v761, 0.0
    %909 = vadd.xlane.f32.xlu0 %v908
    %v910 = vpop.xlane.xlu0 %909
    %v911 = vsel %vm463, %v763, 0.0
    %912 = vadd.xlane.f32.xlu0 %v911
    %v913 = vpop.xlane.xlu0 %912
    %v914 = vsel %vm463, %v765, 0.0
    %915 = vadd.xlane.f32.xlu0 %v914
    %v916 = vpop.xlane.xlu0 %915
    %v917 = vsel %vm463, %v767, 0.0
    %918 = vadd.xlane.f32.xlu0 %v917
    %v919 = vpop.xlane.xlu0 %918
    %v920 = vsel %vm463, %v769, 0.0
    %921 = vadd.xlane.f32.xlu0 %v920
    %v922 = vpop.xlane.xlu0 %921
    %v923 = vsel %vm463, %v771, 0.0
    %924 = vadd.xlane.f32.xlu0 %v923
    %v925 = vpop.xlane.xlu0 %924
    %v926 = vsel %vm463, %v773, 0.0
    %927 = vadd.xlane.f32.xlu0 %v926
    %v928 = vpop.xlane.xlu0 %927
    %v929 = vsel %vm463, %v775, 0.0
    %930 = vadd.xlane.f32.xlu0 %v929
    %v931 = vpop.xlane.xlu0 %930
    %v932 = vsel %vm463, %v777, 0.0
    %933 = vadd.xlane.f32.xlu0 %v932
    %v934 = vpop.xlane.xlu0 %933
    %v935 = vsel %vm463, %v779, 0.0
    %936 = vadd.xlane.f32.xlu0 %v935
    %v937 = vpop.xlane.xlu0 %936
    %v938 = vsel %vm463, %v781, 0.0
    %939 = vadd.xlane.f32.xlu0 %v938
    %v940 = vpop.xlane.xlu0 %939
    %v941 = vsel %vm463, %v783, 0.0
    %942 = vadd.xlane.f32.xlu0 %v941
    %v943 = vpop.xlane.xlu0 %942
    %v944 = vsel %vm463, %v785, 0.0
    %945 = vadd.xlane.f32.xlu0 %v944
    %v946 = vpop.xlane.xlu0 %945
    %v947 = vsel %vm463, %v787, 0.0
    %948 = vadd.xlane.f32.xlu0 %v947
    %v949 = vpop.xlane.xlu0 %948
    %v950 = vsel %vm463, %v789, 0.0
    %951 = vadd.xlane.f32.xlu0 %v950
    %v952 = vpop.xlane.xlu0 %951
    %v953 = vsel %vm463, %v791, 0.0
    %954 = vadd.xlane.f32.xlu0 %v953
    %v955 = vpop.xlane.xlu0 %954
    %v956 = vsel %vm463, %v793, 0.0
    %957 = vadd.xlane.f32.xlu0 %v956
    %v958 = vpop.xlane.xlu0 %957
    %v959 = vsel %vm463, %v795, 0.0
    %960 = vadd.xlane.f32.xlu0 %v959
    %v961 = vpop.xlane.xlu0 %960
    %v962 = vsel %vm463, %v797, 0.0
    %963 = vadd.xlane.f32.xlu0 %v962
    %v964 = vpop.xlane.xlu0 %963
    %v965 = vsel %vm463, %v799, 0.0
    %966 = vadd.xlane.f32.xlu0 %v965
    %v967 = vpop.xlane.xlu0 %966
    %v968 = vsel %vm463, %v801, 0.0
    %969 = vadd.xlane.f32.xlu0 %v968
    %v970 = vpop.xlane.xlu0 %969
    %v971 = vsel %vm463, %v803, 0.0
    %972 = vadd.xlane.f32.xlu0 %v971
    %v973 = vpop.xlane.xlu0 %972
    %v974 = vsel %vm463, %v805, 0.0
    %975 = vadd.xlane.f32.xlu0 %v974
    %v976 = vpop.xlane.xlu0 %975
    %v977 = vsel %vm463, %v807, 0.0
    %978 = vadd.xlane.f32.xlu0 %v977
    %v979 = vpop.xlane.xlu0 %978
    %v980 = vsel %vm463, %v809, 0.0
    %981 = vadd.xlane.f32.xlu0 %v980
    %v982 = vpop.xlane.xlu0 %981
    %v983 = vsel %vm463, %v811, 0.0
    %984 = vadd.xlane.f32.xlu0 %v983
    %v985 = vpop.xlane.xlu0 %984
    %v986 = vsel %vm463, %v813, 0.0
    %987 = vadd.xlane.f32.xlu0 %v986
    %v988 = vpop.xlane.xlu0 %987
    %v989 = vsel %vm463, %v815, 0.0
    %990 = vadd.xlane.f32.xlu0 %v989
    %v991 = vpop.xlane.xlu0 %990
    %v992 = vsel %vm463, %v817, 0.0
    %993 = vadd.xlane.f32.xlu0 %v992
    %v994 = vpop.xlane.xlu0 %993
    %v995 = vsel %vm463, %v819, 0.0
    %996 = vadd.xlane.f32.xlu0 %v995
    %v997 = vpop.xlane.xlu0 %996
    %v998 = vsel %vm463, %v821, 0.0
    %999 = vadd.xlane.f32.xlu0 %v998
    %v1000 = vpop.xlane.xlu0 %999
    %v1001 = vsel %vm463, %v823, 0.0
    %1002 = vadd.xlane.f32.xlu0 %v1001
    %v1003 = vpop.xlane.xlu0 %1002
    %v1004 = vsel %vm463, %v825, 0.0
    %1005 = vadd.xlane.f32.xlu0 %v1004
    %v1006 = vpop.xlane.xlu0 %1005
    %v1007 = vsel %vm463, %v827, 0.0
    %1008 = vadd.xlane.f32.xlu0 %v1007
    %v1009 = vpop.xlane.xlu0 %1008
    %v1010 = vsel %vm463, %v829, 0.0
    %1011 = vadd.xlane.f32.xlu0 %v1010
    %v1012 = vpop.xlane.xlu0 %1011
    %v1013 = vsel %vm463, %v831, 0.0
    %1014 = vadd.xlane.f32.xlu0 %v1013
    %v1015 = vpop.xlane.xlu0 %1014
    %v1016 = vsel %vm463, %v833, 0.0
    %1017 = vadd.xlane.f32.xlu0 %v1016
    %v1018 = vpop.xlane.xlu0 %1017
    %v1019 = vsel %vm463, %v835, 0.0
    %1020 = vadd.xlane.f32.xlu0 %v1019
    %v1021 = vpop.xlane.xlu0 %1020
    %v1022 = vsel %vm463, %v837, 0.0
    %1023 = vadd.xlane.f32.xlu0 %v1022
    %v1024 = vpop.xlane.xlu0 %1023
    %v1025 = vsel %vm463, %v839, 0.0
    %1026 = vadd.xlane.f32.xlu0 %v1025
    %v1027 = vpop.xlane.xlu0 %1026
    %v1028 = vsel %vm463, %v841, 0.0
    %1029 = vadd.xlane.f32.xlu0 %v1028
    %v1030 = vpop.xlane.xlu0 %1029
    %v1031 = vsel %vm463, %v843, 0.0
    %1032 = vadd.xlane.f32.xlu0 %v1031
    %v1033 = vpop.xlane.xlu0 %1032
    %v1034 = vsel %vm463, %v845, 0.0
    %1035 = vadd.xlane.f32.xlu0 %v1034
    %v1036 = vpop.xlane.xlu0 %1035
    %v1037 = vsel %vm463, %v847, 0.0
    %1038 = vadd.xlane.f32.xlu0 %v1037
    %v1039 = vpop.xlane.xlu0 %1038
    %v1040 = vlog2.pop %v850
    %v1041 = vmul.f32 %v1040, 0.6931472
    %v1042 = vlog2.pop %v853
    %v1043 = vmul.f32 %v1042, 0.6931472
    %v1044 = vlog2.pop %v856
    %v1045 = vmul.f32 %v1044, 0.6931472
    %v1046 = vlog2.pop %v859
    %v1047 = vmul.f32 %v1046, 0.6931472
    %v1048 = vlog2.pop %v862
    %v1049 = vmul.f32 %v1048, 0.6931472
    %v1050 = vlog2.pop %v865
    %v1051 = vmul.f32 %v1050, 0.6931472
    %v1052 = vlog2.pop %v868
    %v1053 = vmul.f32 %v1052, 0.6931472
    %v1054 = vlog2.pop %v871
    %v1055 = vmul.f32 %v1054, 0.6931472
    %v1056 = vlog2.pop %v874
    %v1057 = vmul.f32 %v1056, 0.6931472
    %v1058 = vlog2.pop %v877
    %v1059 = vmul.f32 %v1058, 0.6931472
    %v1060 = vlog2.pop %v880
    %v1061 = vmul.f32 %v1060, 0.6931472
    %v1062 = vlog2.pop %v883
    %v1063 = vmul.f32 %v1062, 0.6931472
    %v1064 = vlog2.pop %v886
    %v1065 = vmul.f32 %v1064, 0.6931472
    %v1066 = vlog2.pop %v889
    %v1067 = vmul.f32 %v1066, 0.6931472
    %v1068 = vlog2.pop %v892
    %v1069 = vmul.f32 %v1068, 0.6931472
    %v1070 = vlog2.pop %v895
    %v1071 = vmul.f32 %v1070, 0.6931472
    %v1072 = vlog2.pop %v898
    %v1073 = vmul.f32 %v1072, 0.6931472
    %v1074 = vlog2.pop %v901
    %v1075 = vmul.f32 %v1074, 0.6931472
    %v1076 = vlog2.pop %v904
    %v1077 = vmul.f32 %v1076, 0.6931472
    %v1078 = vlog2.pop %v907
    %v1079 = vmul.f32 %v1078, 0.6931472
    %v1080 = vlog2.pop %v910
    %v1081 = vmul.f32 %v1080, 0.6931472
    %v1082 = vlog2.pop %v913
    %v1083 = vmul.f32 %v1082, 0.6931472
    %v1084 = vlog2.pop %v916
    %v1085 = vmul.f32 %v1084, 0.6931472
    %v1086 = vlog2.pop %v919
    %v1087 = vmul.f32 %v1086, 0.6931472
    %v1088 = vlog2.pop %v922
    %v1089 = vmul.f32 %v1088, 0.6931472
    %v1090 = vlog2.pop %v925
    %v1091 = vmul.f32 %v1090, 0.6931472
    %v1092 = vlog2.pop %v928
    %v1093 = vmul.f32 %v1092, 0.6931472
    %v1094 = vlog2.pop %v931
    %v1095 = vmul.f32 %v1094, 0.6931472
    %v1096 = vlog2.pop %v934
    %v1097 = vmul.f32 %v1096, 0.6931472
    %v1098 = vlog2.pop %v937
    %v1099 = vmul.f32 %v1098, 0.6931472
    %v1100 = vlog2.pop %v940
    %v1101 = vmul.f32 %v1100, 0.6931472
    %v1102 = vlog2.pop %v943
    %v1103 = vmul.f32 %v1102, 0.6931472
    %v1104 = vlog2.pop %v946
    %v1105 = vmul.f32 %v1104, 0.6931472
    %v1106 = vlog2.pop %v949
    %v1107 = vmul.f32 %v1106, 0.6931472
    %v1108 = vlog2.pop %v952
    %v1109 = vmul.f32 %v1108, 0.6931472
    %v1110 = vlog2.pop %v955
    %v1111 = vmul.f32 %v1110, 0.6931472
    %v1112 = vlog2.pop %v958
    %v1113 = vmul.f32 %v1112, 0.6931472
    %v1114 = vlog2.pop %v961
    %v1115 = vmul.f32 %v1114, 0.6931472
    %v1116 = vlog2.pop %v964
    %v1117 = vmul.f32 %v1116, 0.6931472
    %v1118 = vlog2.pop %v967
    %v1119 = vmul.f32 %v1118, 0.6931472
    %v1120 = vlog2.pop %v970
    %v1121 = vmul.f32 %v1120, 0.6931472
    %v1122 = vlog2.pop %v973
    %v1123 = vmul.f32 %v1122, 0.6931472
    %v1124 = vlog2.pop %v976
    %v1125 = vmul.f32 %v1124, 0.6931472
    %v1126 = vlog2.pop %v979
    %v1127 = vmul.f32 %v1126, 0.6931472
    %v1128 = vlog2.pop %v982
    %v1129 = vmul.f32 %v1128, 0.6931472
    %v1130 = vlog2.pop %v985
    %v1131 = vmul.f32 %v1130, 0.6931472
    %v1132 = vlog2.pop %v988
    %v1133 = vmul.f32 %v1132, 0.6931472
    %v1134 = vlog2.pop %v991
    %v1135 = vmul.f32 %v1134, 0.6931472
    %v1136 = vlog2.pop %v994
    %v1137 = vmul.f32 %v1136, 0.6931472
    %v1138 = vlog2.pop %v997
    %v1139 = vmul.f32 %v1138, 0.6931472
    %v1140 = vlog2.pop %v1000
    %v1141 = vmul.f32 %v1140, 0.6931472
    %v1142 = vlog2.pop %v1003
    %v1143 = vmul.f32 %v1142, 0.6931472
    %v1144 = vlog2.pop %v1006
    %v1145 = vmul.f32 %v1144, 0.6931472
    %v1146 = vlog2.pop %v1009
    %v1147 = vmul.f32 %v1146, 0.6931472
    %v1148 = vlog2.pop %v1012
    %v1149 = vmul.f32 %v1148, 0.6931472
    %v1150 = vlog2.pop %v1015
    %v1151 = vmul.f32 %v1150, 0.6931472
    %v1152 = vlog2.pop %v1018
    %v1153 = vmul.f32 %v1152, 0.6931472
    %v1154 = vlog2.pop %v1021
    %v1155 = vmul.f32 %v1154, 0.6931472
    %v1156 = vlog2.pop %v1024
    %v1157 = vmul.f32 %v1156, 0.6931472
    %v1158 = vlog2.pop %v1027
    %v1159 = vmul.f32 %v1158, 0.6931472
    %v1160 = vlog2.pop %v1030
    %v1161 = vmul.f32 %v1160, 0.6931472
    %v1162 = vlog2.pop %v1033
    %v1163 = vmul.f32 %v1162, 0.6931472
    %v1164 = vlog2.pop %v1036
    %v1165 = vmul.f32 %v1164, 0.6931472
    %v1166 = vlog2.pop %v1039
    %v1167 = vmul.f32 %v1166, 0.6931472
    %v1168 = vadd.f32 %v1041, %v466
    %v1169 = vadd.f32 %v1043, %v469
    %v1170 = vadd.f32 %v1045, %v472
    %v1171 = vadd.f32 %v1047, %v475
    %v1172 = vadd.f32 %v1049, %v478
    %v1173 = vadd.f32 %v1051, %v481
    %v1174 = vadd.f32 %v1053, %v484
    %v1175 = vadd.f32 %v1055, %v487
    %v1176 = vadd.f32 %v1057, %v490
    %v1177 = vadd.f32 %v1059, %v493
    %v1178 = vadd.f32 %v1061, %v496
    %v1179 = vadd.f32 %v1063, %v499
    %v1180 = vadd.f32 %v1065, %v502
    %v1181 = vadd.f32 %v1067, %v505
    %v1182 = vadd.f32 %v1069, %v508
    %v1183 = vadd.f32 %v1071, %v511
    %v1184 = vadd.f32 %v1073, %v514
    %v1185 = vadd.f32 %v1075, %v517
    %v1186 = vadd.f32 %v1077, %v520
    %v1187 = vadd.f32 %v1079, %v523
    %v1188 = vadd.f32 %v1081, %v526
    %v1189 = vadd.f32 %v1083, %v529
    %v1190 = vadd.f32 %v1085, %v532
    %v1191 = vadd.f32 %v1087, %v535
    %v1192 = vadd.f32 %v1089, %v538
    %v1193 = vadd.f32 %v1091, %v541
    %v1194 = vadd.f32 %v1093, %v544
    %v1195 = vadd.f32 %v1095, %v547
    %v1196 = vadd.f32 %v1097, %v550
    %v1197 = vadd.f32 %v1099, %v553
    %v1198 = vadd.f32 %v1101, %v556
    %v1199 = vadd.f32 %v1103, %v559
    %v1200 = vadd.f32 %v1105, %v562
    %v1201 = vadd.f32 %v1107, %v565
    %v1202 = vadd.f32 %v1109, %v568
    %v1203 = vadd.f32 %v1111, %v571
    %v1204 = vadd.f32 %v1113, %v574
    %v1205 = vadd.f32 %v1115, %v577
    %v1206 = vadd.f32 %v1117, %v580
    %v1207 = vadd.f32 %v1119, %v583
    %v1208 = vadd.f32 %v1121, %v586
    %v1209 = vadd.f32 %v1123, %v589
    %v1210 = vadd.f32 %v1125, %v592
    %v1211 = vadd.f32 %v1127, %v595
    %v1212 = vadd.f32 %v1129, %v598
    %v1213 = vadd.f32 %v1131, %v601
    %v1214 = vadd.f32 %v1133, %v604
    %v1215 = vadd.f32 %v1135, %v607
    %v1216 = vadd.f32 %v1137, %v610
    %v1217 = vadd.f32 %v1139, %v613
    %v1218 = vadd.f32 %v1141, %v616
    %v1219 = vadd.f32 %v1143, %v619
    %v1220 = vadd.f32 %v1145, %v622
    %v1221 = vadd.f32 %v1147, %v625
    %v1222 = vadd.f32 %v1149, %v628
    %v1223 = vadd.f32 %v1151, %v631
    %v1224 = vadd.f32 %v1153, %v634
    %v1225 = vadd.f32 %v1155, %v637
    %v1226 = vadd.f32 %v1157, %v640
    %v1227 = vadd.f32 %v1159, %v643
    %v1228 = vadd.f32 %v1161, %v646
    %v1229 = vadd.f32 %v1163, %v649
    %v1230 = vadd.f32 %v1165, %v652
    %v1231 = vadd.f32 %v1167, %v655
    %v1232 = vlaneseq
    %v1233 = vand.u32 %v1232, 127
    %1234 = vset.pattern.permute.xlu0 0
    %1235 = vperm.xlu0 %1234, %v76
    %v1236 = vpop.permute.xlu0 %1235
    %1237 = vset.pattern.permute.xlu0 0
    %1238 = vperm.xlu0 %1237, %v77
    %v1239 = vpop.permute.xlu0 %1238
    %1240 = vset.pattern.permute.xlu0 0
    %1241 = vperm.xlu0 %1240, %v78
    %v1242 = vpop.permute.xlu0 %1241
    %1243 = vset.pattern.permute.xlu0 0
    %1244 = vperm.xlu0 %1243, %v79
    %v1245 = vpop.permute.xlu0 %1244
    %1246 = vset.pattern.permute.xlu0 0
    %1247 = vperm.xlu0 %1246, %v80
    %v1248 = vpop.permute.xlu0 %1247
    %1249 = vset.pattern.permute.xlu0 0
    %1250 = vperm.xlu0 %1249, %v81
    %v1251 = vpop.permute.xlu0 %1250
    %1252 = vset.pattern.permute.xlu0 0
    %1253 = vperm.xlu0 %1252, %v82
    %v1254 = vpop.permute.xlu0 %1253
    %1255 = vset.pattern.permute.xlu0 0
    %1256 = vperm.xlu0 %1255, %v83
    %v1257 = vpop.permute.xlu0 %1256
    %1258 = vset.pattern.permute.xlu0 0
    %1259 = vperm.xlu0 %1258, %v84
    %v1260 = vpop.permute.xlu0 %1259
    %1261 = vset.pattern.permute.xlu0 0
    %1262 = vperm.xlu0 %1261, %v85
    %v1263 = vpop.permute.xlu0 %1262
    %1264 = vset.pattern.permute.xlu0 0
    %1265 = vperm.xlu0 %1264, %v86
    %v1266 = vpop.permute.xlu0 %1265
    %1267 = vset.pattern.permute.xlu0 0
    %1268 = vperm.xlu0 %1267, %v87
    %v1269 = vpop.permute.xlu0 %1268
    %1270 = vset.pattern.permute.xlu0 0
    %1271 = vperm.xlu0 %1270, %v88
    %v1272 = vpop.permute.xlu0 %1271
    %1273 = vset.pattern.permute.xlu0 0
    %1274 = vperm.xlu0 %1273, %v89
    %v1275 = vpop.permute.xlu0 %1274
    %1276 = vset.pattern.permute.xlu0 0
    %1277 = vperm.xlu0 %1276, %v90
    %v1278 = vpop.permute.xlu0 %1277
    %1279 = vset.pattern.permute.xlu0 0
    %1280 = vperm.xlu0 %1279, %v91
    %v1281 = vpop.permute.xlu0 %1280
    %1282 = vset.pattern.permute.xlu0 0
    %1283 = vperm.xlu0 %1282, %v92
    %v1284 = vpop.permute.xlu0 %1283
    %1285 = vset.pattern.permute.xlu0 0
    %1286 = vperm.xlu0 %1285, %v93
    %v1287 = vpop.permute.xlu0 %1286
    %1288 = vset.pattern.permute.xlu0 0
    %1289 = vperm.xlu0 %1288, %v94
    %v1290 = vpop.permute.xlu0 %1289
    %1291 = vset.pattern.permute.xlu0 0
    %1292 = vperm.xlu0 %1291, %v95
    %v1293 = vpop.permute.xlu0 %1292
    %1294 = vset.pattern.permute.xlu0 0
    %1295 = vperm.xlu0 %1294, %v96
    %v1296 = vpop.permute.xlu0 %1295
    %1297 = vset.pattern.permute.xlu0 0
    %1298 = vperm.xlu0 %1297, %v97
    %v1299 = vpop.permute.xlu0 %1298
    %1300 = vset.pattern.permute.xlu0 0
    %1301 = vperm.xlu0 %1300, %v98
    %v1302 = vpop.permute.xlu0 %1301
    %1303 = vset.pattern.permute.xlu0 0
    %1304 = vperm.xlu0 %1303, %v99
    %v1305 = vpop.permute.xlu0 %1304
    %1306 = vset.pattern.permute.xlu0 0
    %1307 = vperm.xlu0 %1306, %v100
    %v1308 = vpop.permute.xlu0 %1307
    %1309 = vset.pattern.permute.xlu0 0
    %1310 = vperm.xlu0 %1309, %v101
    %v1311 = vpop.permute.xlu0 %1310
    %1312 = vset.pattern.permute.xlu0 0
    %1313 = vperm.xlu0 %1312, %v102
    %v1314 = vpop.permute.xlu0 %1313
    %1315 = vset.pattern.permute.xlu0 0
    %1316 = vperm.xlu0 %1315, %v103
    %v1317 = vpop.permute.xlu0 %1316
    %1318 = vset.pattern.permute.xlu0 0
    %1319 = vperm.xlu0 %1318, %v104
    %v1320 = vpop.permute.xlu0 %1319
    %1321 = vset.pattern.permute.xlu0 0
    %1322 = vperm.xlu0 %1321, %v105
    %v1323 = vpop.permute.xlu0 %1322
    %1324 = vset.pattern.permute.xlu0 0
    %1325 = vperm.xlu0 %1324, %v106
    %v1326 = vpop.permute.xlu0 %1325
    %1327 = vset.pattern.permute.xlu0 0
    %1328 = vperm.xlu0 %1327, %v107
    %v1329 = vpop.permute.xlu0 %1328
    %1330 = vset.pattern.permute.xlu0 0
    %1331 = vperm.xlu0 %1330, %v108
    %v1332 = vpop.permute.xlu0 %1331
    %1333 = vset.pattern.permute.xlu0 0
    %1334 = vperm.xlu0 %1333, %v109
    %v1335 = vpop.permute.xlu0 %1334
    %1336 = vset.pattern.permute.xlu0 0
    %1337 = vperm.xlu0 %1336, %v110
    %v1338 = vpop.permute.xlu0 %1337
    %1339 = vset.pattern.permute.xlu0 0
    %1340 = vperm.xlu0 %1339, %v111
    %v1341 = vpop.permute.xlu0 %1340
    %1342 = vset.pattern.permute.xlu0 0
    %1343 = vperm.xlu0 %1342, %v112
    %v1344 = vpop.permute.xlu0 %1343
    %1345 = vset.pattern.permute.xlu0 0
    %1346 = vperm.xlu0 %1345, %v113
    %v1347 = vpop.permute.xlu0 %1346
    %1348 = vset.pattern.permute.xlu0 0
    %1349 = vperm.xlu0 %1348, %v114
    %v1350 = vpop.permute.xlu0 %1349
    %1351 = vset.pattern.permute.xlu0 0
    %1352 = vperm.xlu0 %1351, %v115
    %v1353 = vpop.permute.xlu0 %1352
    %1354 = vset.pattern.permute.xlu0 0
    %1355 = vperm.xlu0 %1354, %v116
    %v1356 = vpop.permute.xlu0 %1355
    %1357 = vset.pattern.permute.xlu0 0
    %1358 = vperm.xlu0 %1357, %v117
    %v1359 = vpop.permute.xlu0 %1358
    %1360 = vset.pattern.permute.xlu0 0
    %1361 = vperm.xlu0 %1360, %v118
    %v1362 = vpop.permute.xlu0 %1361
    %1363 = vset.pattern.permute.xlu0 0
    %1364 = vperm.xlu0 %1363, %v119
    %v1365 = vpop.permute.xlu0 %1364
    %1366 = vset.pattern.permute.xlu0 0
    %1367 = vperm.xlu0 %1366, %v120
    %v1368 = vpop.permute.xlu0 %1367
    %1369 = vset.pattern.permute.xlu0 0
    %1370 = vperm.xlu0 %1369, %v121
    %v1371 = vpop.permute.xlu0 %1370
    %1372 = vset.pattern.permute.xlu0 0
    %1373 = vperm.xlu0 %1372, %v122
    %v1374 = vpop.permute.xlu0 %1373
    %1375 = vset.pattern.permute.xlu0 0
    %1376 = vperm.xlu0 %1375, %v123
    %v1377 = vpop.permute.xlu0 %1376
    %1378 = vset.pattern.permute.xlu0 0
    %1379 = vperm.xlu0 %1378, %v124
    %v1380 = vpop.permute.xlu0 %1379
    %1381 = vset.pattern.permute.xlu0 0
    %1382 = vperm.xlu0 %1381, %v125
    %v1383 = vpop.permute.xlu0 %1382
    %1384 = vset.pattern.permute.xlu0 0
    %1385 = vperm.xlu0 %1384, %v126
    %v1386 = vpop.permute.xlu0 %1385
    %1387 = vset.pattern.permute.xlu0 0
    %1388 = vperm.xlu0 %1387, %v127
    %v1389 = vpop.permute.xlu0 %1388
    %1390 = vset.pattern.permute.xlu0 0
    %1391 = vperm.xlu0 %1390, %v128
    %v1392 = vpop.permute.xlu0 %1391
    %1393 = vset.pattern.permute.xlu0 0
    %1394 = vperm.xlu0 %1393, %v129
    %v1395 = vpop.permute.xlu0 %1394
    %1396 = vset.pattern.permute.xlu0 0
    %1397 = vperm.xlu0 %1396, %v130
    %v1398 = vpop.permute.xlu0 %1397
    %1399 = vset.pattern.permute.xlu0 0
    %1400 = vperm.xlu0 %1399, %v131
    %v1401 = vpop.permute.xlu0 %1400
    %1402 = vset.pattern.permute.xlu0 0
    %1403 = vperm.xlu0 %1402, %v132
    %v1404 = vpop.permute.xlu0 %1403
    %1405 = vset.pattern.permute.xlu0 0
    %1406 = vperm.xlu0 %1405, %v133
    %v1407 = vpop.permute.xlu0 %1406
    %1408 = vset.pattern.permute.xlu0 0
    %1409 = vperm.xlu0 %1408, %v134
    %v1410 = vpop.permute.xlu0 %1409
    %1411 = vset.pattern.permute.xlu0 0
    %1412 = vperm.xlu0 %1411, %v135
    %v1413 = vpop.permute.xlu0 %1412
    %1414 = vset.pattern.permute.xlu0 0
    %1415 = vperm.xlu0 %1414, %v136
    %v1416 = vpop.permute.xlu0 %1415
    %1417 = vset.pattern.permute.xlu0 0
    %1418 = vperm.xlu0 %1417, %v137
    %v1419 = vpop.permute.xlu0 %1418
    %1420 = vset.pattern.permute.xlu0 0
    %1421 = vperm.xlu0 %1420, %v138
    %v1422 = vpop.permute.xlu0 %1421
    %1423 = vset.pattern.permute.xlu0 0
    %1424 = vperm.xlu0 %1423, %v139
    %v1425 = vpop.permute.xlu0 %1424
    %vm1426 = vcmp.eq.s32.totalorder %v1233, %v1236
    %vm1427 = vcmp.eq.s32.totalorder %v1233, %v1239
    %vm1428 = vcmp.eq.s32.totalorder %v1233, %v1242
    %vm1429 = vcmp.eq.s32.totalorder %v1233, %v1245
    %vm1430 = vcmp.eq.s32.totalorder %v1233, %v1248
    %vm1431 = vcmp.eq.s32.totalorder %v1233, %v1251
    %vm1432 = vcmp.eq.s32.totalorder %v1233, %v1254
    %vm1433 = vcmp.eq.s32.totalorder %v1233, %v1257
    %vm1434 = vcmp.eq.s32.totalorder %v1233, %v1260
    %vm1435 = vcmp.eq.s32.totalorder %v1233, %v1263
    %vm1436 = vcmp.eq.s32.totalorder %v1233, %v1266
    %vm1437 = vcmp.eq.s32.totalorder %v1233, %v1269
    %vm1438 = vcmp.eq.s32.totalorder %v1233, %v1272
    %vm1439 = vcmp.eq.s32.totalorder %v1233, %v1275
    %vm1440 = vcmp.eq.s32.totalorder %v1233, %v1278
    %vm1441 = vcmp.eq.s32.totalorder %v1233, %v1281
    %vm1442 = vcmp.eq.s32.totalorder %v1233, %v1284
    %vm1443 = vcmp.eq.s32.totalorder %v1233, %v1287
    %vm1444 = vcmp.eq.s32.totalorder %v1233, %v1290
    %vm1445 = vcmp.eq.s32.totalorder %v1233, %v1293
    %vm1446 = vcmp.eq.s32.totalorder %v1233, %v1296
    %vm1447 = vcmp.eq.s32.totalorder %v1233, %v1299
    %vm1448 = vcmp.eq.s32.totalorder %v1233, %v1302
    %vm1449 = vcmp.eq.s32.totalorder %v1233, %v1305
    %vm1450 = vcmp.eq.s32.totalorder %v1233, %v1308
    %vm1451 = vcmp.eq.s32.totalorder %v1233, %v1311
    %vm1452 = vcmp.eq.s32.totalorder %v1233, %v1314
    %vm1453 = vcmp.eq.s32.totalorder %v1233, %v1317
    %vm1454 = vcmp.eq.s32.totalorder %v1233, %v1320
    %vm1455 = vcmp.eq.s32.totalorder %v1233, %v1323
    %vm1456 = vcmp.eq.s32.totalorder %v1233, %v1326
    %vm1457 = vcmp.eq.s32.totalorder %v1233, %v1329
    %vm1458 = vcmp.eq.s32.totalorder %v1233, %v1332
    %vm1459 = vcmp.eq.s32.totalorder %v1233, %v1335
    %vm1460 = vcmp.eq.s32.totalorder %v1233, %v1338
    %vm1461 = vcmp.eq.s32.totalorder %v1233, %v1341
    %vm1462 = vcmp.eq.s32.totalorder %v1233, %v1344
    %vm1463 = vcmp.eq.s32.totalorder %v1233, %v1347
    %vm1464 = vcmp.eq.s32.totalorder %v1233, %v1350
    %vm1465 = vcmp.eq.s32.totalorder %v1233, %v1353
    %vm1466 = vcmp.eq.s32.totalorder %v1233, %v1356
    %vm1467 = vcmp.eq.s32.totalorder %v1233, %v1359
    %vm1468 = vcmp.eq.s32.totalorder %v1233, %v1362
    %vm1469 = vcmp.eq.s32.totalorder %v1233, %v1365
    %vm1470 = vcmp.eq.s32.totalorder %v1233, %v1368
    %vm1471 = vcmp.eq.s32.totalorder %v1233, %v1371
    %vm1472 = vcmp.eq.s32.totalorder %v1233, %v1374
    %vm1473 = vcmp.eq.s32.totalorder %v1233, %v1377
    %vm1474 = vcmp.eq.s32.totalorder %v1233, %v1380
    %vm1475 = vcmp.eq.s32.totalorder %v1233, %v1383
    %vm1476 = vcmp.eq.s32.totalorder %v1233, %v1386
    %vm1477 = vcmp.eq.s32.totalorder %v1233, %v1389
    %vm1478 = vcmp.eq.s32.totalorder %v1233, %v1392
    %vm1479 = vcmp.eq.s32.totalorder %v1233, %v1395
    %vm1480 = vcmp.eq.s32.totalorder %v1233, %v1398
    %vm1481 = vcmp.eq.s32.totalorder %v1233, %v1401
    %vm1482 = vcmp.eq.s32.totalorder %v1233, %v1404
    %vm1483 = vcmp.eq.s32.totalorder %v1233, %v1407
    %vm1484 = vcmp.eq.s32.totalorder %v1233, %v1410
    %vm1485 = vcmp.eq.s32.totalorder %v1233, %v1413
    %vm1486 = vcmp.eq.s32.totalorder %v1233, %v1416
    %vm1487 = vcmp.eq.s32.totalorder %v1233, %v1419
    %vm1488 = vcmp.eq.s32.totalorder %v1233, %v1422
    %vm1489 = vcmp.eq.s32.totalorder %v1233, %v1425
    %v1490 = vsel %vm1426, %v12, 0.0
    %v1491 = vsel %vm1427, %v13, 0.0
    %v1492 = vsel %vm1428, %v14, 0.0
    %v1493 = vsel %vm1429, %v15, 0.0
    %v1494 = vsel %vm1430, %v16, 0.0
    %v1495 = vsel %vm1431, %v17, 0.0
    %v1496 = vsel %vm1432, %v18, 0.0
    %v1497 = vsel %vm1433, %v19, 0.0
    %v1498 = vsel %vm1434, %v20, 0.0
    %v1499 = vsel %vm1435, %v21, 0.0
    %v1500 = vsel %vm1436, %v22, 0.0
    %v1501 = vsel %vm1437, %v23, 0.0
    %v1502 = vsel %vm1438, %v24, 0.0
    %v1503 = vsel %vm1439, %v25, 0.0
    %v1504 = vsel %vm1440, %v26, 0.0
    %v1505 = vsel %vm1441, %v27, 0.0
    %v1506 = vsel %vm1442, %v28, 0.0
    %v1507 = vsel %vm1443, %v29, 0.0
    %v1508 = vsel %vm1444, %v30, 0.0
    %v1509 = vsel %vm1445, %v31, 0.0
    %v1510 = vsel %vm1446, %v32, 0.0
    %v1511 = vsel %vm1447, %v33, 0.0
    %v1512 = vsel %vm1448, %v34, 0.0
    %v1513 = vsel %vm1449, %v35, 0.0
    %v1514 = vsel %vm1450, %v36, 0.0
    %v1515 = vsel %vm1451, %v37, 0.0
    %v1516 = vsel %vm1452, %v38, 0.0
    %v1517 = vsel %vm1453, %v39, 0.0
    %v1518 = vsel %vm1454, %v40, 0.0
    %v1519 = vsel %vm1455, %v41, 0.0
    %v1520 = vsel %vm1456, %v42, 0.0
    %v1521 = vsel %vm1457, %v43, 0.0
    %v1522 = vsel %vm1458, %v44, 0.0
    %v1523 = vsel %vm1459, %v45, 0.0
    %v1524 = vsel %vm1460, %v46, 0.0
    %v1525 = vsel %vm1461, %v47, 0.0
    %v1526 = vsel %vm1462, %v48, 0.0
    %v1527 = vsel %vm1463, %v49, 0.0
    %v1528 = vsel %vm1464, %v50, 0.0
    %v1529 = vsel %vm1465, %v51, 0.0
    %v1530 = vsel %vm1466, %v52, 0.0
    %v1531 = vsel %vm1467, %v53, 0.0
    %v1532 = vsel %vm1468, %v54, 0.0
    %v1533 = vsel %vm1469, %v55, 0.0
    %v1534 = vsel %vm1470, %v56, 0.0
    %v1535 = vsel %vm1471, %v57, 0.0
    %v1536 = vsel %vm1472, %v58, 0.0
    %v1537 = vsel %vm1473, %v59, 0.0
    %v1538 = vsel %vm1474, %v60, 0.0
    %v1539 = vsel %vm1475, %v61, 0.0
    %v1540 = vsel %vm1476, %v62, 0.0
    %v1541 = vsel %vm1477, %v63, 0.0
    %v1542 = vsel %vm1478, %v64, 0.0
    %v1543 = vsel %vm1479, %v65, 0.0
    %v1544 = vsel %vm1480, %v66, 0.0
    %v1545 = vsel %vm1481, %v67, 0.0
    %v1546 = vsel %vm1482, %v68, 0.0
    %v1547 = vsel %vm1483, %v69, 0.0
    %v1548 = vsel %vm1484, %v70, 0.0
    %v1549 = vsel %vm1485, %v71, 0.0
    %v1550 = vsel %vm1486, %v72, 0.0
    %v1551 = vsel %vm1487, %v73, 0.0
    %v1552 = vsel %vm1488, %v74, 0.0
    %v1553 = vsel %vm1489, %v75, 0.0
    %v1554 = vsel %vm463, %v1490, 0.0
    %1555 = vadd.xlane.f32.xlu0 %v1554
    %v1556 = vpop.xlane.xlu0 %1555
    %v1557 = vsel %vm463, %v1491, 0.0
    %1558 = vadd.xlane.f32.xlu0 %v1557
    %v1559 = vpop.xlane.xlu0 %1558
    %v1560 = vsel %vm463, %v1492, 0.0
    %1561 = vadd.xlane.f32.xlu0 %v1560
    %v1562 = vpop.xlane.xlu0 %1561
    %v1563 = vsel %vm463, %v1493, 0.0
    %1564 = vadd.xlane.f32.xlu0 %v1563
    %v1565 = vpop.xlane.xlu0 %1564
    %v1566 = vsel %vm463, %v1494, 0.0
    %1567 = vadd.xlane.f32.xlu0 %v1566
    %v1568 = vpop.xlane.xlu0 %1567
    %v1569 = vsel %vm463, %v1495, 0.0
    %1570 = vadd.xlane.f32.xlu0 %v1569
    %v1571 = vpop.xlane.xlu0 %1570
    %v1572 = vsel %vm463, %v1496, 0.0
    %1573 = vadd.xlane.f32.xlu0 %v1572
    %v1574 = vpop.xlane.xlu0 %1573
    %v1575 = vsel %vm463, %v1497, 0.0
    %1576 = vadd.xlane.f32.xlu0 %v1575
    %v1577 = vpop.xlane.xlu0 %1576
    %v1578 = vsel %vm463, %v1498, 0.0
    %1579 = vadd.xlane.f32.xlu0 %v1578
    %v1580 = vpop.xlane.xlu0 %1579
    %v1581 = vsel %vm463, %v1499, 0.0
    %1582 = vadd.xlane.f32.xlu0 %v1581
    %v1583 = vpop.xlane.xlu0 %1582
    %v1584 = vsel %vm463, %v1500, 0.0
    %1585 = vadd.xlane.f32.xlu0 %v1584
    %v1586 = vpop.xlane.xlu0 %1585
    %v1587 = vsel %vm463, %v1501, 0.0
    %1588 = vadd.xlane.f32.xlu0 %v1587
    %v1589 = vpop.xlane.xlu0 %1588
    %v1590 = vsel %vm463, %v1502, 0.0
    %1591 = vadd.xlane.f32.xlu0 %v1590
    %v1592 = vpop.xlane.xlu0 %1591
    %v1593 = vsel %vm463, %v1503, 0.0
    %1594 = vadd.xlane.f32.xlu0 %v1593
    %v1595 = vpop.xlane.xlu0 %1594
    %v1596 = vsel %vm463, %v1504, 0.0
    %1597 = vadd.xlane.f32.xlu0 %v1596
    %v1598 = vpop.xlane.xlu0 %1597
    %v1599 = vsel %vm463, %v1505, 0.0
    %1600 = vadd.xlane.f32.xlu0 %v1599
    %v1601 = vpop.xlane.xlu0 %1600
    %v1602 = vsel %vm463, %v1506, 0.0
    %1603 = vadd.xlane.f32.xlu0 %v1602
    %v1604 = vpop.xlane.xlu0 %1603
    %v1605 = vsel %vm463, %v1507, 0.0
    %1606 = vadd.xlane.f32.xlu0 %v1605
    %v1607 = vpop.xlane.xlu0 %1606
    %v1608 = vsel %vm463, %v1508, 0.0
    %1609 = vadd.xlane.f32.xlu0 %v1608
    %v1610 = vpop.xlane.xlu0 %1609
    %v1611 = vsel %vm463, %v1509, 0.0
    %1612 = vadd.xlane.f32.xlu0 %v1611
    %v1613 = vpop.xlane.xlu0 %1612
    %v1614 = vsel %vm463, %v1510, 0.0
    %1615 = vadd.xlane.f32.xlu0 %v1614
    %v1616 = vpop.xlane.xlu0 %1615
    %v1617 = vsel %vm463, %v1511, 0.0
    %1618 = vadd.xlane.f32.xlu0 %v1617
    %v1619 = vpop.xlane.xlu0 %1618
    %v1620 = vsel %vm463, %v1512, 0.0
    %1621 = vadd.xlane.f32.xlu0 %v1620
    %v1622 = vpop.xlane.xlu0 %1621
    %v1623 = vsel %vm463, %v1513, 0.0
    %1624 = vadd.xlane.f32.xlu0 %v1623
    %v1625 = vpop.xlane.xlu0 %1624
    %v1626 = vsel %vm463, %v1514, 0.0
    %1627 = vadd.xlane.f32.xlu0 %v1626
    %v1628 = vpop.xlane.xlu0 %1627
    %v1629 = vsel %vm463, %v1515, 0.0
    %1630 = vadd.xlane.f32.xlu0 %v1629
    %v1631 = vpop.xlane.xlu0 %1630
    %v1632 = vsel %vm463, %v1516, 0.0
    %1633 = vadd.xlane.f32.xlu0 %v1632
    %v1634 = vpop.xlane.xlu0 %1633
    %v1635 = vsel %vm463, %v1517, 0.0
    %1636 = vadd.xlane.f32.xlu0 %v1635
    %v1637 = vpop.xlane.xlu0 %1636
    %v1638 = vsel %vm463, %v1518, 0.0
    %1639 = vadd.xlane.f32.xlu0 %v1638
    %v1640 = vpop.xlane.xlu0 %1639
    %v1641 = vsel %vm463, %v1519, 0.0
    %1642 = vadd.xlane.f32.xlu0 %v1641
    %v1643 = vpop.xlane.xlu0 %1642
    %v1644 = vsel %vm463, %v1520, 0.0
    %1645 = vadd.xlane.f32.xlu0 %v1644
    %v1646 = vpop.xlane.xlu0 %1645
    %v1647 = vsel %vm463, %v1521, 0.0
    %1648 = vadd.xlane.f32.xlu0 %v1647
    %v1649 = vpop.xlane.xlu0 %1648
    %v1650 = vsel %vm463, %v1522, 0.0
    %1651 = vadd.xlane.f32.xlu0 %v1650
    %v1652 = vpop.xlane.xlu0 %1651
    %v1653 = vsel %vm463, %v1523, 0.0
    %1654 = vadd.xlane.f32.xlu0 %v1653
    %v1655 = vpop.xlane.xlu0 %1654
    %v1656 = vsel %vm463, %v1524, 0.0
    %1657 = vadd.xlane.f32.xlu0 %v1656
    %v1658 = vpop.xlane.xlu0 %1657
    %v1659 = vsel %vm463, %v1525, 0.0
    %1660 = vadd.xlane.f32.xlu0 %v1659
    %v1661 = vpop.xlane.xlu0 %1660
    %v1662 = vsel %vm463, %v1526, 0.0
    %1663 = vadd.xlane.f32.xlu0 %v1662
    %v1664 = vpop.xlane.xlu0 %1663
    %v1665 = vsel %vm463, %v1527, 0.0
    %1666 = vadd.xlane.f32.xlu0 %v1665
    %v1667 = vpop.xlane.xlu0 %1666
    %v1668 = vsel %vm463, %v1528, 0.0
    %1669 = vadd.xlane.f32.xlu0 %v1668
    %v1670 = vpop.xlane.xlu0 %1669
    %v1671 = vsel %vm463, %v1529, 0.0
    %1672 = vadd.xlane.f32.xlu0 %v1671
    %v1673 = vpop.xlane.xlu0 %1672
    %v1674 = vsel %vm463, %v1530, 0.0
    %1675 = vadd.xlane.f32.xlu0 %v1674
    %v1676 = vpop.xlane.xlu0 %1675
    %v1677 = vsel %vm463, %v1531, 0.0
    %1678 = vadd.xlane.f32.xlu0 %v1677
    %v1679 = vpop.xlane.xlu0 %1678
    %v1680 = vsel %vm463, %v1532, 0.0
    %1681 = vadd.xlane.f32.xlu0 %v1680
    %v1682 = vpop.xlane.xlu0 %1681
    %v1683 = vsel %vm463, %v1533, 0.0
    %1684 = vadd.xlane.f32.xlu0 %v1683
    %v1685 = vpop.xlane.xlu0 %1684
    %v1686 = vsel %vm463, %v1534, 0.0
    %1687 = vadd.xlane.f32.xlu0 %v1686
    %v1688 = vpop.xlane.xlu0 %1687
    %v1689 = vsel %vm463, %v1535, 0.0
    %1690 = vadd.xlane.f32.xlu0 %v1689
    %v1691 = vpop.xlane.xlu0 %1690
    %v1692 = vsel %vm463, %v1536, 0.0
    %1693 = vadd.xlane.f32.xlu0 %v1692
    %v1694 = vpop.xlane.xlu0 %1693
    %v1695 = vsel %vm463, %v1537, 0.0
    %1696 = vadd.xlane.f32.xlu0 %v1695
    %v1697 = vpop.xlane.xlu0 %1696
    %v1698 = vsel %vm463, %v1538, 0.0
    %1699 = vadd.xlane.f32.xlu0 %v1698
    %v1700 = vpop.xlane.xlu0 %1699
    %v1701 = vsel %vm463, %v1539, 0.0
    %1702 = vadd.xlane.f32.xlu0 %v1701
    %v1703 = vpop.xlane.xlu0 %1702
    %v1704 = vsel %vm463, %v1540, 0.0
    %1705 = vadd.xlane.f32.xlu0 %v1704
    %v1706 = vpop.xlane.xlu0 %1705
    %v1707 = vsel %vm463, %v1541, 0.0
    %1708 = vadd.xlane.f32.xlu0 %v1707
    %v1709 = vpop.xlane.xlu0 %1708
    %v1710 = vsel %vm463, %v1542, 0.0
    %1711 = vadd.xlane.f32.xlu0 %v1710
    %v1712 = vpop.xlane.xlu0 %1711
    %v1713 = vsel %vm463, %v1543, 0.0
    %1714 = vadd.xlane.f32.xlu0 %v1713
    %v1715 = vpop.xlane.xlu0 %1714
    %v1716 = vsel %vm463, %v1544, 0.0
    %1717 = vadd.xlane.f32.xlu0 %v1716
    %v1718 = vpop.xlane.xlu0 %1717
    %v1719 = vsel %vm463, %v1545, 0.0
    %1720 = vadd.xlane.f32.xlu0 %v1719
    %v1721 = vpop.xlane.xlu0 %1720
    %v1722 = vsel %vm463, %v1546, 0.0
    %1723 = vadd.xlane.f32.xlu0 %v1722
    %v1724 = vpop.xlane.xlu0 %1723
    %v1725 = vsel %vm463, %v1547, 0.0
    %1726 = vadd.xlane.f32.xlu0 %v1725
    %v1727 = vpop.xlane.xlu0 %1726
    %v1728 = vsel %vm463, %v1548, 0.0
    %1729 = vadd.xlane.f32.xlu0 %v1728
    %v1730 = vpop.xlane.xlu0 %1729
    %v1731 = vsel %vm463, %v1549, 0.0
    %1732 = vadd.xlane.f32.xlu0 %v1731
    %v1733 = vpop.xlane.xlu0 %1732
    %v1734 = vsel %vm463, %v1550, 0.0
    %1735 = vadd.xlane.f32.xlu0 %v1734
    %v1736 = vpop.xlane.xlu0 %1735
    %v1737 = vsel %vm463, %v1551, 0.0
    %1738 = vadd.xlane.f32.xlu0 %v1737
    %v1739 = vpop.xlane.xlu0 %1738
    %v1740 = vsel %vm463, %v1552, 0.0
    %1741 = vadd.xlane.f32.xlu0 %v1740
    %v1742 = vpop.xlane.xlu0 %1741
    %v1743 = vsel %vm463, %v1553, 0.0
    %1744 = vadd.xlane.f32.xlu0 %v1743
    %v1745 = vpop.xlane.xlu0 %1744
    %v1746 = vsub.f32 %v1168, %v1556
    %v1747 = vsub.f32 %v1169, %v1559
    %v1748 = vsub.f32 %v1170, %v1562
    %v1749 = vsub.f32 %v1171, %v1565
    %v1750 = vsub.f32 %v1172, %v1568
    %v1751 = vsub.f32 %v1173, %v1571
    %v1752 = vsub.f32 %v1174, %v1574
    %v1753 = vsub.f32 %v1175, %v1577
    %v1754 = vsub.f32 %v1176, %v1580
    %v1755 = vsub.f32 %v1177, %v1583
    %v1756 = vsub.f32 %v1178, %v1586
    %v1757 = vsub.f32 %v1179, %v1589
    %v1758 = vsub.f32 %v1180, %v1592
    %v1759 = vsub.f32 %v1181, %v1595
    %v1760 = vsub.f32 %v1182, %v1598
    %v1761 = vsub.f32 %v1183, %v1601
    %v1762 = vsub.f32 %v1184, %v1604
    %v1763 = vsub.f32 %v1185, %v1607
    %v1764 = vsub.f32 %v1186, %v1610
    %v1765 = vsub.f32 %v1187, %v1613
    %v1766 = vsub.f32 %v1188, %v1616
    %v1767 = vsub.f32 %v1189, %v1619
    %v1768 = vsub.f32 %v1190, %v1622
    %v1769 = vsub.f32 %v1191, %v1625
    %v1770 = vsub.f32 %v1192, %v1628
    %v1771 = vsub.f32 %v1193, %v1631
    %v1772 = vsub.f32 %v1194, %v1634
    %v1773 = vsub.f32 %v1195, %v1637
    %v1774 = vsub.f32 %v1196, %v1640
    %v1775 = vsub.f32 %v1197, %v1643
    %v1776 = vsub.f32 %v1198, %v1646
    %v1777 = vsub.f32 %v1199, %v1649
    %v1778 = vsub.f32 %v1200, %v1652
    %v1779 = vsub.f32 %v1201, %v1655
    %v1780 = vsub.f32 %v1202, %v1658
    %v1781 = vsub.f32 %v1203, %v1661
    %v1782 = vsub.f32 %v1204, %v1664
    %v1783 = vsub.f32 %v1205, %v1667
    %v1784 = vsub.f32 %v1206, %v1670
    %v1785 = vsub.f32 %v1207, %v1673
    %v1786 = vsub.f32 %v1208, %v1676
    %v1787 = vsub.f32 %v1209, %v1679
    %v1788 = vsub.f32 %v1210, %v1682
    %v1789 = vsub.f32 %v1211, %v1685
    %v1790 = vsub.f32 %v1212, %v1688
    %v1791 = vsub.f32 %v1213, %v1691
    %v1792 = vsub.f32 %v1214, %v1694
    %v1793 = vsub.f32 %v1215, %v1697
    %v1794 = vsub.f32 %v1216, %v1700
    %v1795 = vsub.f32 %v1217, %v1703
    %v1796 = vsub.f32 %v1218, %v1706
    %v1797 = vsub.f32 %v1219, %v1709
    %v1798 = vsub.f32 %v1220, %v1712
    %v1799 = vsub.f32 %v1221, %v1715
    %v1800 = vsub.f32 %v1222, %v1718
    %v1801 = vsub.f32 %v1223, %v1721
    %v1802 = vsub.f32 %v1224, %v1724
    %v1803 = vsub.f32 %v1225, %v1727
    %v1804 = vsub.f32 %v1226, %v1730
    %v1805 = vsub.f32 %v1227, %v1733
    %v1806 = vsub.f32 %v1228, %v1736
    %v1807 = vsub.f32 %v1229, %v1739
    %v1808 = vsub.f32 %v1230, %v1742
    %v1809 = vsub.f32 %v1231, %v1745
    %v1810 = vsel %vm399, %v1746, 0.0
    %v1811 = vsel %vm400, %v1747, 0.0
    %v1812 = vsel %vm401, %v1748, 0.0
    %v1813 = vsel %vm402, %v1749, 0.0
    %v1814 = vsel %vm403, %v1750, 0.0
    %v1815 = vsel %vm404, %v1751, 0.0
    %v1816 = vsel %vm405, %v1752, 0.0
    %v1817 = vsel %vm406, %v1753, 0.0
    %v1818 = vsel %vm407, %v1754, 0.0
    %v1819 = vsel %vm408, %v1755, 0.0
    %v1820 = vsel %vm409, %v1756, 0.0
    %v1821 = vsel %vm410, %v1757, 0.0
    %v1822 = vsel %vm411, %v1758, 0.0
    %v1823 = vsel %vm412, %v1759, 0.0
    %v1824 = vsel %vm413, %v1760, 0.0
    %v1825 = vsel %vm414, %v1761, 0.0
    %v1826 = vsel %vm415, %v1762, 0.0
    %v1827 = vsel %vm416, %v1763, 0.0
    %v1828 = vsel %vm417, %v1764, 0.0
    %v1829 = vsel %vm418, %v1765, 0.0
    %v1830 = vsel %vm419, %v1766, 0.0
    %v1831 = vsel %vm420, %v1767, 0.0
    %v1832 = vsel %vm421, %v1768, 0.0
    %v1833 = vsel %vm422, %v1769, 0.0
    %v1834 = vsel %vm423, %v1770, 0.0
    %v1835 = vsel %vm424, %v1771, 0.0
    %v1836 = vsel %vm425, %v1772, 0.0
    %v1837 = vsel %vm426, %v1773, 0.0
    %v1838 = vsel %vm427, %v1774, 0.0
    %v1839 = vsel %vm428, %v1775, 0.0
    %v1840 = vsel %vm429, %v1776, 0.0
    %v1841 = vsel %vm430, %v1777, 0.0
    %v1842 = vsel %vm431, %v1778, 0.0
    %v1843 = vsel %vm432, %v1779, 0.0
    %v1844 = vsel %vm433, %v1780, 0.0
    %v1845 = vsel %vm434, %v1781, 0.0
    %v1846 = vsel %vm435, %v1782, 0.0
    %v1847 = vsel %vm436, %v1783, 0.0
    %v1848 = vsel %vm437, %v1784, 0.0
    %v1849 = vsel %vm438, %v1785, 0.0
    %v1850 = vsel %vm439, %v1786, 0.0
    %v1851 = vsel %vm440, %v1787, 0.0
    %v1852 = vsel %vm441, %v1788, 0.0
    %v1853 = vsel %vm442, %v1789, 0.0
    %v1854 = vsel %vm443, %v1790, 0.0
    %v1855 = vsel %vm444, %v1791, 0.0
    %v1856 = vsel %vm445, %v1792, 0.0
    %v1857 = vsel %vm446, %v1793, 0.0
    %v1858 = vsel %vm447, %v1794, 0.0
    %v1859 = vsel %vm448, %v1795, 0.0
    %v1860 = vsel %vm449, %v1796, 0.0
    %v1861 = vsel %vm450, %v1797, 0.0
    %v1862 = vsel %vm451, %v1798, 0.0
    %v1863 = vsel %vm452, %v1799, 0.0
    %v1864 = vsel %vm453, %v1800, 0.0
    %v1865 = vsel %vm454, %v1801, 0.0
    %v1866 = vsel %vm455, %v1802, 0.0
    %v1867 = vsel %vm456, %v1803, 0.0
    %v1868 = vsel %vm457, %v1804, 0.0
    %v1869 = vsel %vm458, %v1805, 0.0
    %v1870 = vsel %vm459, %v1806, 0.0
    %v1871 = vsel %vm460, %v1807, 0.0
    %v1872 = vsel %vm461, %v1808, 0.0
    %v1873 = vsel %vm462, %v1809, 0.0
    %vm1874 = vcmask 7168
    %v1875 = vsel %vm1874, %v1810, 0.0
    %v1876 = vsel %vm1874, %v1811, 0.0
    %v1877 = vadd.f32 %v1875, %v1876
    %v1878 = vsel %vm1874, %v1812, 0.0
    %v1879 = vadd.f32 %v1877, %v1878
    %v1880 = vsel %vm1874, %v1813, 0.0
    %v1881 = vadd.f32 %v1879, %v1880
    %v1882 = vsel %vm1874, %v1814, 0.0
    %v1883 = vadd.f32 %v1881, %v1882
    %v1884 = vsel %vm1874, %v1815, 0.0
    %v1885 = vadd.f32 %v1883, %v1884
    %v1886 = vsel %vm1874, %v1816, 0.0
    %v1887 = vadd.f32 %v1885, %v1886
    %v1888 = vsel %vm1874, %v1817, 0.0
    %v1889 = vadd.f32 %v1887, %v1888
    %v1890 = vsel %vm1874, %v1818, 0.0
    %v1891 = vadd.f32 %v1889, %v1890
    %v1892 = vsel %vm1874, %v1819, 0.0
    %v1893 = vadd.f32 %v1891, %v1892
    %v1894 = vsel %vm1874, %v1820, 0.0
    %v1895 = vadd.f32 %v1893, %v1894
    %v1896 = vsel %vm1874, %v1821, 0.0
    %v1897 = vadd.f32 %v1895, %v1896
    %v1898 = vsel %vm1874, %v1822, 0.0
    %v1899 = vadd.f32 %v1897, %v1898
    %v1900 = vsel %vm1874, %v1823, 0.0
    %v1901 = vadd.f32 %v1899, %v1900
    %v1902 = vsel %vm1874, %v1824, 0.0
    %v1903 = vadd.f32 %v1901, %v1902
    %v1904 = vsel %vm1874, %v1825, 0.0
    %v1905 = vadd.f32 %v1903, %v1904
    %v1906 = vsel %vm1874, %v1826, 0.0
    %v1907 = vadd.f32 %v1905, %v1906
    %v1908 = vsel %vm1874, %v1827, 0.0
    %v1909 = vadd.f32 %v1907, %v1908
    %v1910 = vsel %vm1874, %v1828, 0.0
    %v1911 = vadd.f32 %v1909, %v1910
    %v1912 = vsel %vm1874, %v1829, 0.0
    %v1913 = vadd.f32 %v1911, %v1912
    %v1914 = vsel %vm1874, %v1830, 0.0
    %v1915 = vadd.f32 %v1913, %v1914
    %v1916 = vsel %vm1874, %v1831, 0.0
    %v1917 = vadd.f32 %v1915, %v1916
    %v1918 = vsel %vm1874, %v1832, 0.0
    %v1919 = vadd.f32 %v1917, %v1918
    %v1920 = vsel %vm1874, %v1833, 0.0
    %v1921 = vadd.f32 %v1919, %v1920
    %v1922 = vsel %vm1874, %v1834, 0.0
    %v1923 = vadd.f32 %v1921, %v1922
    %v1924 = vsel %vm1874, %v1835, 0.0
    %v1925 = vadd.f32 %v1923, %v1924
    %v1926 = vsel %vm1874, %v1836, 0.0
    %v1927 = vadd.f32 %v1925, %v1926
    %v1928 = vsel %vm1874, %v1837, 0.0
    %v1929 = vadd.f32 %v1927, %v1928
    %v1930 = vsel %vm1874, %v1838, 0.0
    %v1931 = vadd.f32 %v1929, %v1930
    %v1932 = vsel %vm1874, %v1839, 0.0
    %v1933 = vadd.f32 %v1931, %v1932
    %v1934 = vsel %vm1874, %v1840, 0.0
    %v1935 = vadd.f32 %v1933, %v1934
    %v1936 = vsel %vm1874, %v1841, 0.0
    %v1937 = vadd.f32 %v1935, %v1936
    %v1938 = vsel %vm1874, %v1842, 0.0
    %v1939 = vadd.f32 %v1937, %v1938
    %v1940 = vsel %vm1874, %v1843, 0.0
    %v1941 = vadd.f32 %v1939, %v1940
    %v1942 = vsel %vm1874, %v1844, 0.0
    %v1943 = vadd.f32 %v1941, %v1942
    %v1944 = vsel %vm1874, %v1845, 0.0
    %v1945 = vadd.f32 %v1943, %v1944
    %v1946 = vsel %vm1874, %v1846, 0.0
    %v1947 = vadd.f32 %v1945, %v1946
    %v1948 = vsel %vm1874, %v1847, 0.0
    %v1949 = vadd.f32 %v1947, %v1948
    %v1950 = vsel %vm1874, %v1848, 0.0
    %v1951 = vadd.f32 %v1949, %v1950
    %v1952 = vsel %vm1874, %v1849, 0.0
    %v1953 = vadd.f32 %v1951, %v1952
    %v1954 = vsel %vm1874, %v1850, 0.0
    %v1955 = vadd.f32 %v1953, %v1954
    %v1956 = vsel %vm1874, %v1851, 0.0
    %v1957 = vadd.f32 %v1955, %v1956
    %v1958 = vsel %vm1874, %v1852, 0.0
    %v1959 = vadd.f32 %v1957, %v1958
    %v1960 = vsel %vm1874, %v1853, 0.0
    %v1961 = vadd.f32 %v1959, %v1960
    %v1962 = vsel %vm1874, %v1854, 0.0
    %v1963 = vadd.f32 %v1961, %v1962
    %v1964 = vsel %vm1874, %v1855, 0.0
    %v1965 = vadd.f32 %v1963, %v1964
    %v1966 = vsel %vm1874, %v1856, 0.0
    %v1967 = vadd.f32 %v1965, %v1966
    %v1968 = vsel %vm1874, %v1857, 0.0
    %v1969 = vadd.f32 %v1967, %v1968
    %v1970 = vsel %vm1874, %v1858, 0.0
    %v1971 = vadd.f32 %v1969, %v1970
    %v1972 = vsel %vm1874, %v1859, 0.0
    %v1973 = vadd.f32 %v1971, %v1972
    %v1974 = vsel %vm1874, %v1860, 0.0
    %v1975 = vadd.f32 %v1973, %v1974
    %v1976 = vsel %vm1874, %v1861, 0.0
    %v1977 = vadd.f32 %v1975, %v1976
    %v1978 = vsel %vm1874, %v1862, 0.0
    %v1979 = vadd.f32 %v1977, %v1978
    %v1980 = vsel %vm1874, %v1863, 0.0
    %v1981 = vadd.f32 %v1979, %v1980
    %v1982 = vsel %vm1874, %v1864, 0.0
    %v1983 = vadd.f32 %v1981, %v1982
    %v1984 = vsel %vm1874, %v1865, 0.0
    %v1985 = vadd.f32 %v1983, %v1984
    %v1986 = vsel %vm1874, %v1866, 0.0
    %v1987 = vadd.f32 %v1985, %v1986
    %v1988 = vsel %vm1874, %v1867, 0.0
    %v1989 = vadd.f32 %v1987, %v1988
    %v1990 = vsel %vm1874, %v1868, 0.0
    %v1991 = vadd.f32 %v1989, %v1990
    %v1992 = vsel %vm1874, %v1869, 0.0
    %v1993 = vadd.f32 %v1991, %v1992
    %v1994 = vsel %vm1874, %v1870, 0.0
    %v1995 = vadd.f32 %v1993, %v1994
    %v1996 = vsel %vm1874, %v1871, 0.0
    %v1997 = vadd.f32 %v1995, %v1996
    %v1998 = vsel %vm1874, %v1872, 0.0
    %v1999 = vadd.f32 %v1997, %v1998
    %v2000 = vsel %vm1874, %v1873, 0.0
    %v2001 = vadd.f32 %v1999, %v2000
    %2002 = vadd.xlane.f32.xlu0 %v2001
    %v2003 = vpop.xlane.xlu0 %2002
    %v2004 = vrot.slane %v2003, 4
    %v2005 = vadd.f32 %v2003, %v2004
    %v2006 = vrot.slane %v2005, 2
    %v2007 = vadd.f32 %v2005, %v2006
    %v2008 = vrot.slane %v2007, 1
    %v2009 = vadd.f32 %v2007, %v2008
    %s2010 = vtos %v2009
    %v2011 = vsel %vm399, 1.0, 0.0
    %v2012 = vsel %vm400, 1.0, 0.0
    %v2013 = vsel %vm401, 1.0, 0.0
    %v2014 = vsel %vm402, 1.0, 0.0
    %v2015 = vsel %vm403, 1.0, 0.0
    %v2016 = vsel %vm404, 1.0, 0.0
    %v2017 = vsel %vm405, 1.0, 0.0
    %v2018 = vsel %vm406, 1.0, 0.0
    %v2019 = vsel %vm407, 1.0, 0.0
    %v2020 = vsel %vm408, 1.0, 0.0
    %v2021 = vsel %vm409, 1.0, 0.0
    %v2022 = vsel %vm410, 1.0, 0.0
    %v2023 = vsel %vm411, 1.0, 0.0
    %v2024 = vsel %vm412, 1.0, 0.0
    %v2025 = vsel %vm413, 1.0, 0.0
    %v2026 = vsel %vm414, 1.0, 0.0
    %v2027 = vsel %vm415, 1.0, 0.0
    %v2028 = vsel %vm416, 1.0, 0.0
    %v2029 = vsel %vm417, 1.0, 0.0
    %v2030 = vsel %vm418, 1.0, 0.0
    %v2031 = vsel %vm419, 1.0, 0.0
    %v2032 = vsel %vm420, 1.0, 0.0
    %v2033 = vsel %vm421, 1.0, 0.0
    %v2034 = vsel %vm422, 1.0, 0.0
    %v2035 = vsel %vm423, 1.0, 0.0
    %v2036 = vsel %vm424, 1.0, 0.0
    %v2037 = vsel %vm425, 1.0, 0.0
    %v2038 = vsel %vm426, 1.0, 0.0
    %v2039 = vsel %vm427, 1.0, 0.0
    %v2040 = vsel %vm428, 1.0, 0.0
    %v2041 = vsel %vm429, 1.0, 0.0
    %v2042 = vsel %vm430, 1.0, 0.0
    %v2043 = vsel %vm431, 1.0, 0.0
    %v2044 = vsel %vm432, 1.0, 0.0
    %v2045 = vsel %vm433, 1.0, 0.0
    %v2046 = vsel %vm434, 1.0, 0.0
    %v2047 = vsel %vm435, 1.0, 0.0
    %v2048 = vsel %vm436, 1.0, 0.0
    %v2049 = vsel %vm437, 1.0, 0.0
    %v2050 = vsel %vm438, 1.0, 0.0
    %v2051 = vsel %vm439, 1.0, 0.0
    %v2052 = vsel %vm440, 1.0, 0.0
    %v2053 = vsel %vm441, 1.0, 0.0
    %v2054 = vsel %vm442, 1.0, 0.0
    %v2055 = vsel %vm443, 1.0, 0.0
    %v2056 = vsel %vm444, 1.0, 0.0
    %v2057 = vsel %vm445, 1.0, 0.0
    %v2058 = vsel %vm446, 1.0, 0.0
    %v2059 = vsel %vm447, 1.0, 0.0
    %v2060 = vsel %vm448, 1.0, 0.0
    %v2061 = vsel %vm449, 1.0, 0.0
    %v2062 = vsel %vm450, 1.0, 0.0
    %v2063 = vsel %vm451, 1.0, 0.0
    %v2064 = vsel %vm452, 1.0, 0.0
    %v2065 = vsel %vm453, 1.0, 0.0
    %v2066 = vsel %vm454, 1.0, 0.0
    %v2067 = vsel %vm455, 1.0, 0.0
    %v2068 = vsel %vm456, 1.0, 0.0
    %v2069 = vsel %vm457, 1.0, 0.0
    %v2070 = vsel %vm458, 1.0, 0.0
    %v2071 = vsel %vm459, 1.0, 0.0
    %v2072 = vsel %vm460, 1.0, 0.0
    %v2073 = vsel %vm461, 1.0, 0.0
    %v2074 = vsel %vm462, 1.0, 0.0
    %v2075 = vsel %vm1874, %v2011, 0.0
    %v2076 = vsel %vm1874, %v2012, 0.0
    %v2077 = vadd.f32 %v2075, %v2076
    %v2078 = vsel %vm1874, %v2013, 0.0
    %v2079 = vadd.f32 %v2077, %v2078
    %v2080 = vsel %vm1874, %v2014, 0.0
    %v2081 = vadd.f32 %v2079, %v2080
    %v2082 = vsel %vm1874, %v2015, 0.0
    %v2083 = vadd.f32 %v2081, %v2082
    %v2084 = vsel %vm1874, %v2016, 0.0
    %v2085 = vadd.f32 %v2083, %v2084
    %v2086 = vsel %vm1874, %v2017, 0.0
    %v2087 = vadd.f32 %v2085, %v2086
    %v2088 = vsel %vm1874, %v2018, 0.0
    %v2089 = vadd.f32 %v2087, %v2088
    %v2090 = vsel %vm1874, %v2019, 0.0
    %v2091 = vadd.f32 %v2089, %v2090
    %v2092 = vsel %vm1874, %v2020, 0.0
    %v2093 = vadd.f32 %v2091, %v2092
    %v2094 = vsel %vm1874, %v2021, 0.0
    %v2095 = vadd.f32 %v2093, %v2094
    %v2096 = vsel %vm1874, %v2022, 0.0
    %v2097 = vadd.f32 %v2095, %v2096
    %v2098 = vsel %vm1874, %v2023, 0.0
    %v2099 = vadd.f32 %v2097, %v2098
    %v2100 = vsel %vm1874, %v2024, 0.0
    %v2101 = vadd.f32 %v2099, %v2100
    %v2102 = vsel %vm1874, %v2025, 0.0
    %v2103 = vadd.f32 %v2101, %v2102
    %v2104 = vsel %vm1874, %v2026, 0.0
    %v2105 = vadd.f32 %v2103, %v2104
    %v2106 = vsel %vm1874, %v2027, 0.0
    %v2107 = vadd.f32 %v2105, %v2106
    %v2108 = vsel %vm1874, %v2028, 0.0
    %v2109 = vadd.f32 %v2107, %v2108
    %v2110 = vsel %vm1874, %v2029, 0.0
    %v2111 = vadd.f32 %v2109, %v2110
    %v2112 = vsel %vm1874, %v2030, 0.0
    %v2113 = vadd.f32 %v2111, %v2112
    %v2114 = vsel %vm1874, %v2031, 0.0
    %v2115 = vadd.f32 %v2113, %v2114
    %v2116 = vsel %vm1874, %v2032, 0.0
    %v2117 = vadd.f32 %v2115, %v2116
    %v2118 = vsel %vm1874, %v2033, 0.0
    %v2119 = vadd.f32 %v2117, %v2118
    %v2120 = vsel %vm1874, %v2034, 0.0
    %v2121 = vadd.f32 %v2119, %v2120
    %v2122 = vsel %vm1874, %v2035, 0.0
    %v2123 = vadd.f32 %v2121, %v2122
    %v2124 = vsel %vm1874, %v2036, 0.0
    %v2125 = vadd.f32 %v2123, %v2124
    %v2126 = vsel %vm1874, %v2037, 0.0
    %v2127 = vadd.f32 %v2125, %v2126
    %v2128 = vsel %vm1874, %v2038, 0.0
    %v2129 = vadd.f32 %v2127, %v2128
    %v2130 = vsel %vm1874, %v2039, 0.0
    %v2131 = vadd.f32 %v2129, %v2130
    %v2132 = vsel %vm1874, %v2040, 0.0
    %v2133 = vadd.f32 %v2131, %v2132
    %v2134 = vsel %vm1874, %v2041, 0.0
    %v2135 = vadd.f32 %v2133, %v2134
    %v2136 = vsel %vm1874, %v2042, 0.0
    %v2137 = vadd.f32 %v2135, %v2136
    %v2138 = vsel %vm1874, %v2043, 0.0
    %v2139 = vadd.f32 %v2137, %v2138
    %v2140 = vsel %vm1874, %v2044, 0.0
    %v2141 = vadd.f32 %v2139, %v2140
    %v2142 = vsel %vm1874, %v2045, 0.0
    %v2143 = vadd.f32 %v2141, %v2142
    %v2144 = vsel %vm1874, %v2046, 0.0
    %v2145 = vadd.f32 %v2143, %v2144
    %v2146 = vsel %vm1874, %v2047, 0.0
    %v2147 = vadd.f32 %v2145, %v2146
    %v2148 = vsel %vm1874, %v2048, 0.0
    %v2149 = vadd.f32 %v2147, %v2148
    %v2150 = vsel %vm1874, %v2049, 0.0
    %v2151 = vadd.f32 %v2149, %v2150
    %v2152 = vsel %vm1874, %v2050, 0.0
    %v2153 = vadd.f32 %v2151, %v2152
    %v2154 = vsel %vm1874, %v2051, 0.0
    %v2155 = vadd.f32 %v2153, %v2154
    %v2156 = vsel %vm1874, %v2052, 0.0
    %v2157 = vadd.f32 %v2155, %v2156
    %v2158 = vsel %vm1874, %v2053, 0.0
    %v2159 = vadd.f32 %v2157, %v2158
    %v2160 = vsel %vm1874, %v2054, 0.0
    %v2161 = vadd.f32 %v2159, %v2160
    %v2162 = vsel %vm1874, %v2055, 0.0
    %v2163 = vadd.f32 %v2161, %v2162
    %v2164 = vsel %vm1874, %v2056, 0.0
    %v2165 = vadd.f32 %v2163, %v2164
    %v2166 = vsel %vm1874, %v2057, 0.0
    %v2167 = vadd.f32 %v2165, %v2166
    %v2168 = vsel %vm1874, %v2058, 0.0
    %v2169 = vadd.f32 %v2167, %v2168
    %v2170 = vsel %vm1874, %v2059, 0.0
    %v2171 = vadd.f32 %v2169, %v2170
    %v2172 = vsel %vm1874, %v2060, 0.0
    %v2173 = vadd.f32 %v2171, %v2172
    %v2174 = vsel %vm1874, %v2061, 0.0
    %v2175 = vadd.f32 %v2173, %v2174
    %v2176 = vsel %vm1874, %v2062, 0.0
    %v2177 = vadd.f32 %v2175, %v2176
    %v2178 = vsel %vm1874, %v2063, 0.0
    %v2179 = vadd.f32 %v2177, %v2178
    %v2180 = vsel %vm1874, %v2064, 0.0
    %v2181 = vadd.f32 %v2179, %v2180
    %v2182 = vsel %vm1874, %v2065, 0.0
    %v2183 = vadd.f32 %v2181, %v2182
    %v2184 = vsel %vm1874, %v2066, 0.0
    %v2185 = vadd.f32 %v2183, %v2184
    %v2186 = vsel %vm1874, %v2067, 0.0
    %v2187 = vadd.f32 %v2185, %v2186
    %v2188 = vsel %vm1874, %v2068, 0.0
    %v2189 = vadd.f32 %v2187, %v2188
    %v2190 = vsel %vm1874, %v2069, 0.0
    %v2191 = vadd.f32 %v2189, %v2190
    %v2192 = vsel %vm1874, %v2070, 0.0
    %v2193 = vadd.f32 %v2191, %v2192
    %v2194 = vsel %vm1874, %v2071, 0.0
    %v2195 = vadd.f32 %v2193, %v2194
    %v2196 = vsel %vm1874, %v2072, 0.0
    %v2197 = vadd.f32 %v2195, %v2196
    %v2198 = vsel %vm1874, %v2073, 0.0
    %v2199 = vadd.f32 %v2197, %v2198
    %v2200 = vsel %vm1874, %v2074, 0.0
    %v2201 = vadd.f32 %v2199, %v2200
    %2202 = vadd.xlane.f32.xlu0 %v2201
    %v2203 = vpop.xlane.xlu0 %2202
    %v2204 = vrot.slane %v2203, 4
    %v2205 = vadd.f32 %v2203, %v2204
    %v2206 = vrot.slane %v2205, 2
    %v2207 = vadd.f32 %v2205, %v2206
    %v2208 = vrot.slane %v2207, 1
    %v2209 = vadd.f32 %v2207, %v2208
    %s2210 = vtos %v2209
    %vm2211 = vcmp.eq.s32.totalorder %v141, 0
    %vm2212 = vcmp.eq.s32.totalorder %v1233, 0
    %vm2213 = vmand %vm2211, %vm2212
    %vm2214 = vcmp.eq.s32.totalorder %v1233, 1
    %vm2215 = vmand %vm2211, %vm2214
    %v2216 = vstv %s2210
    %v2217 = vsel %vm2215, %v2216, 0.0
    %v2218 = vstv %s2010
    %v2219 = vsel %vm2213, %v2218, %v2217
    %2220 = vst [vmem:[#allocation2] sm:$0xff] %v2219
    // Predicated region
    $region10: #{tpu_custom_call.1} parent=1 // pred_check
      _
    $region11: #{tpu_custom_call.1} parent=1 // pred_check_branch
      %2222 = sbr.rel (0) target = $region13
    $region12: #{tpu_custom_call.1} parent=1 // pred_region
      %s2224 = ssub.s32 128, 128
      %2225 = vsyncadd [#allocation3], %s2224
      %s2227 = sshll.u32 [#allocation2], 4
      %s2228 = int_to_ptr.vmem [resolvable:$true] %s2227
      %2230 = dma.vmem_to_hbm [thread:$0]  %s2228, 128, %s2, [#allocation3]
    $region13: #{tpu_custom_call.1} parent=1 // pred_fallthru
      _
    // Predicated region
    $region14: #{tpu_custom_call.1} parent=1 // pred_check
      _
    $region15: #{tpu_custom_call.1} parent=1 // pred_check_branch
      %2232 = sbr.rel (0) target = $region17
    $region16: #{tpu_custom_call.1} parent=1 // pred_region
      %2233 = dma.done [#allocation3], 128
    $region17: #{tpu_custom_call.1} parent=1 // pred_fallthru
      _
    %2234 = vsyncpa [#allocation3], 1

</llo_original>
